<compile_context>
chip_gen: v7x
topology: tpu7x:2x2x1
jax: 0.10.0
libtpu: 0.0.40
codegen_flags: <defaults>
</compile_context>

<pallas_src>
import functools

import jax
import jax.numpy as jnp
from jax import lax
from jax.experimental import pallas as pl
from jax.experimental.pallas import tpu as pltpu

EPS = 1e-5
VMEM_LIMIT = 32 * 1024 * 1024


# --------------------------------------------------------------------------
# kernels (all operate on one image per grid step, layout (C, H*W))
# --------------------------------------------------------------------------
def _stats_kernel(x_ref, sum_ref, ssq_ref):
    """Per-image partial sums of x for the input BatchNorm statistics."""
    x = x_ref[0]                                        # (C, HW) f32
    sum_ref[0] = jnp.sum(x, axis=1, keepdims=True)
    ssq_ref[0] = jnp.sum(x * x, axis=1, keepdims=True)


def _layer1_kernel(x_ref, s_ref, t_ref, w_ref, h_ref, sum_ref, ssq_ref):
    """BN(+folded affine) -> ReLU -> 1x1 conv (channel matmul) + h1 partials."""
    a = jnp.maximum(x_ref[0] * s_ref[...] + t_ref[...], 0.0)          # (Cin, HW) f32
    h = jnp.dot(w_ref[...], a.astype(w_ref.dtype),
                preferred_element_type=jnp.float32)                   # (Hc, HW) f32
    h_ref[0] = h.astype(h_ref.dtype)
    sum_ref[0] = jnp.sum(h, axis=1, keepdims=True)
    ssq_ref[0] = jnp.sum(h * h, axis=1, keepdims=True)


def _conv3x3_kernel(h1_ref, s_ref, t_ref, w_ref, m_ref,
                    h2_ref, sum_ref, ssq_ref, *, H, W):
    """BN -> ReLU -> 3x3 conv (stride 1, pad 1) as a single im2col matmul.

    Taps are lane shifts of the flattened (C, H*W) image via pltpu.roll; the
    precomputed (9, 1, HW) masks zero out taps that fall across the image
    border (the roll wrap-around only ever lands on masked positions).
    """
    HW = H * W
    a = jnp.maximum(h1_ref[0] * s_ref[...] + t_ref[...], 0.0)         # (Hc, HW) f32
    taps = []
    for ki in range(3):
        for kj in range(3):
            ti = ki * 3 + kj
            delta = (ki - 1) * W + (kj - 1)
            if delta == 0:
                shifted = a
            else:
                shifted = pltpu.roll(a, shift=(-delta) % HW, axis=1)
            taps.append(shifted * m_ref[ti])                          # (Hc, HW)
    col = jnp.concatenate(taps, axis=0).astype(w_ref.dtype)           # (9*Hc, HW)
    h2 = jnp.dot(w_ref[...], col, preferred_element_type=jnp.float32)  # (Hc, HW)
    h2_ref[0] = h2.astype(h2_ref.dtype)
    sum_ref[0] = jnp.sum(h2, axis=1, keepdims=True)
    ssq_ref[0] = jnp.sum(h2 * h2, axis=1, keepdims=True)


def _layer3_kernel(h2_ref, s_ref, t_ref, w_ref, x_ref, *rest, has_proj):
    """BN -> ReLU -> 1x1 conv (or the 1x1 core of the stride-2 transpose conv)
    plus the identity / projection branch and the residual add."""
    if has_proj:
        ss_ref, ts_ref, ws_ref, out_ref = rest
    else:
        (out_ref,) = rest
    a = jnp.maximum(h2_ref[0] * s_ref[...] + t_ref[...], 0.0)         # (Hc, HW)
    y = jnp.dot(w_ref[...], a.astype(w_ref.dtype),
                preferred_element_type=jnp.float32)                   # (Dc, HW)
    if has_proj:
        ai = jnp.maximum(x_ref[0] * ss_ref[...] + ts_ref[...], 0.0)   # (Cin, HW)
        idn = jnp.dot(ws_ref[...], ai.astype(ws_ref.dtype),
                      preferred_element_type=jnp.float32)             # (Dc, HW)
    else:
        idn = x_ref[0]
    out_ref[0] = (y + idn).astype(out_ref.dtype)


# --------------------------------------------------------------------------
# spec / glue helpers
# --------------------------------------------------------------------------
def _img_spec(c, hw):
    """One (C, hw) tile per image of an (N, C, hw) array."""
    return pl.BlockSpec((1, c, hw), lambda n: (n, 0, 0))


def _rep_spec(shape):
    """Small parameter array, identical block for every grid step."""
    rank = len(shape)

    def idx(n):
        return (0,) * rank

    return pl.BlockSpec(tuple(shape), idx)


def _cparams():
    return pltpu.CompilerParams(dimension_semantics=("parallel",),
                                vmem_limit_bytes=VMEM_LIMIT)


def _tap_masks(H, W):
    """(9, 1, H*W) f32 border-validity masks for the 3x3 conv taps."""
    ii, jj = jnp.meshgrid(jnp.arange(H), jnp.arange(W), indexing="ij")
    masks = []
    for ki in range(3):
        for kj in range(3):
            oi, oj = ki - 1, kj - 1
            m = ((ii + oi >= 0) & (ii + oi < H) & (jj + oj >= 0) & (jj + oj < W))
            masks.append(m.reshape(1, H * W))
    return jnp.stack(masks, axis=0).astype(jnp.float32)


def _batch_stats(psum, pssq, count):
    """Finalize per-image partial sums into batch mean / biased variance."""
    s = jnp.sum(psum, axis=0)[:, 0]
    q = jnp.sum(pssq, axis=0)[:, 0]
    mu = s / count
    var = jnp.maximum(q / count - mu * mu, 0.0)
    return mu, var


def _fold_bn(gamma, beta, mu, var):
    """Fold BN statistics + affine into per-channel scale / shift, (C, 1)."""
    scale = gamma * lax.rsqrt(var + EPS)
    shift = beta - mu * scale
    return scale[:, None].astype(jnp.float32), shift[:, None].astype(jnp.float32)


# --------------------------------------------------------------------------
# forward
# --------------------------------------------------------------------------
@functools.partial(jax.jit, static_argnames=("upsample", "compute_dtype"))
def decoder_bottleneck_forward(x_nchw, params, *, upsample,
                               compute_dtype=jnp.bfloat16):
    """Forward pass. Input/output are NCHW like the PyTorch module."""
    N, Cin, H, W = x_nchw.shape
    HW = H * W
    R = N * HW
    Hc = params["w1"].shape[0]
    Dc = params["w3"].shape[0]
    has_proj = bool(upsample) or (Cin != Dc)
    f32 = jnp.float32
    cp = _cparams()

    # NCHW is already channel-major per image: (N, C, H*W) with HW on lanes.
    x3 = x_nchw.reshape(N, Cin, HW).astype(f32)
    w1 = params["w1"].astype(compute_dtype)
    w2 = params["w2"].astype(compute_dtype)
    w3 = params["w3"].astype(compute_dtype)

    # ---- pass 0: input batch statistics (shared by layer1 and projection) --
    xs, xq = pl.pallas_call(
        _stats_kernel,
        grid=(N,),
        in_specs=[_img_spec(Cin, HW)],
        out_specs=(_img_spec(Cin, 1), _img_spec(Cin, 1)),
        out_shape=(jax.ShapeDtypeStruct((N, Cin, 1), f32),
                   jax.ShapeDtypeStruct((N, Cin, 1), f32)),
        compiler_params=cp,
    )(x3)
    mu_x, var_x = _batch_stats(xs, xq, R)
    s1, t1 = _fold_bn(params["g1"], params["b1"], mu_x, var_x)

    # ---- pass 1: BN + ReLU + 1x1 conv, fused h1 stat partials --------------
    h1, h1s, h1q = pl.pallas_call(
        _layer1_kernel,
        grid=(N,),
        in_specs=[_img_spec(Cin, HW), _rep_spec((Cin, 1)), _rep_spec((Cin, 1)),
                  _rep_spec((Hc, Cin))],
        out_specs=(_img_spec(Hc, HW), _img_spec(Hc, 1), _img_spec(Hc, 1)),
        out_shape=(jax.ShapeDtypeStruct((N, Hc, HW), compute_dtype),
                   jax.ShapeDtypeStruct((N, Hc, 1), f32),
                   jax.ShapeDtypeStruct((N, Hc, 1), f32)),
        compiler_params=cp,
    )(x3, s1, t1, w1)
    mu1, var1 = _batch_stats(h1s, h1q, R)
    s2, t2 = _fold_bn(params["g2"], params["b2"], mu1, var1)

    # ---- pass 2: BN + ReLU + 3x3 conv as one K = 9*Hc im2col matmul --------
    # TODO(synk): for very large H*W add a second grid axis over row-bands
    # with a one-row halo'd input block; per-image tiles suffice here.
    masks = _tap_masks(H, W)
    h2, h2s, h2q = pl.pallas_call(
        functools.partial(_conv3x3_kernel, H=H, W=W),
        grid=(N,),
        in_specs=[_img_spec(Hc, HW), _rep_spec((Hc, 1)), _rep_spec((Hc, 1)),
                  _rep_spec((Hc, 9 * Hc)), _rep_spec((9, 1, HW))],
        out_specs=(_img_spec(Hc, HW), _img_spec(Hc, 1), _img_spec(Hc, 1)),
        out_shape=(jax.ShapeDtypeStruct((N, Hc, HW), compute_dtype),
                   jax.ShapeDtypeStruct((N, Hc, 1), f32),
                   jax.ShapeDtypeStruct((N, Hc, 1), f32)),
        compiler_params=cp,
    )(h1, s2, t2, w2, masks)
    mu2, var2 = _batch_stats(h2s, h2q, R)
    s3, t3 = _fold_bn(params["g3"], params["b3"], mu2, var2)

    # ---- pass 3: BN + ReLU + 1x1 conv (+ identity / projection) ------------
    ins = [h2, s3, t3, w3, x3]
    specs = [_img_spec(Hc, HW), _rep_spec((Hc, 1)), _rep_spec((Hc, 1)),
             _rep_spec((Dc, Hc)), _img_spec(Cin, HW)]
    if has_proj:
        ss, ts = _fold_bn(params["gs"], params["bs"], mu_x, var_x)
        ws = params["ws"].astype(compute_dtype)
        ins += [ss, ts, ws]
        specs += [_rep_spec((Cin, 1)), _rep_spec((Cin, 1)), _rep_spec((Dc, Cin))]
    out3 = pl.pallas_call(
        functools.partial(_layer3_kernel, has_proj=has_proj),
        grid=(N,),
        in_specs=specs,
        out_specs=_img_spec(Dc, HW),
        out_shape=jax.ShapeDtypeStruct((N, Dc, HW), f32),
        compiler_params=cp,
    )(*ins)

    out = out3.reshape(N, Dc, H, W)                      # already NCHW
    if upsample:
        # ConvTranspose2d(kernel=1, stride=2, output_padding=1): values land at
        # even spatial positions of a (2H, 2W) map, zeros elsewhere — done with
        # interior padding, no 4x zero tensor + second rewrite.
        # TODO(synk): fuse this dilated scatter into the kernel's output write.
        out = lax.pad(out, jnp.array(0.0, out.dtype),
                      [(0, 0, 0), (0, 0, 0), (0, 1, 1), (0, 1, 1)])
    return out


# --------------------------------------------------------------------------
# parameters (torch layouts -> kernel layouts)
# --------------------------------------------------------------------------
def init_params(key, in_channels, hidden_channels, down_channels, upsample):
    ks = jax.random.split(key, 12)

    def conv_w(k, cout, cin, kh, kw):      # torch Conv2d layout (out, in, kh, kw)
        return (jax.random.normal(k, (cout, cin, kh, kw), jnp.float32)
                / jnp.sqrt(cin * kh * kw))

    def bn(kg, kb, c):
        gamma = 0.5 + jax.random.uniform(kg, (c,), jnp.float32)
        beta = 0.1 * jax.random.normal(kb, (c,), jnp.float32)
        return gamma, beta

    g1, b1 = bn(ks[0], ks[1], in_channels)
    g2, b2 = bn(ks[2], ks[3], hidden_channels)
    g3, b3 = bn(ks[4], ks[5], hidden_channels)
    w1_t = conv_w(ks[6], hidden_channels, in_channels, 1, 1)
    w2_t = conv_w(ks[7], hidden_channels, hidden_channels, 3, 3)

    params = {
        "g1": g1, "b1": b1, "g2": g2, "b2": b2, "g3": g3, "b3": b3,
        "w1": w1_t[:, :, 0, 0],                                    # (Hc, Cin)
        # tap-major (ki,kj), then input channel — matches the im2col row order
        "w2": jnp.transpose(w2_t, (0, 2, 3, 1)).reshape(
            hidden_channels, 9 * hidden_channels),                 # (Hc, 9*Hc)
        "w2_hwio": jnp.transpose(w2_t, (2, 3, 1, 0)),              # reference only
    }
    if upsample:
        # ConvTranspose2d weight layout is (in, out, kh, kw)
        w3_t = (jax.random.normal(ks[8], (hidden_channels, down_channels, 1, 1),
                                  jnp.float32) / jnp.sqrt(hidden_channels))
        params["w3"] = jnp.transpose(w3_t[:, :, 0, 0])             # (Dc, Hc)
        gs, bs = bn(ks[9], ks[10], in_channels)
        ws_t = (jax.random.normal(ks[11], (in_channels, down_channels, 1, 1),
                                  jnp.float32) / jnp.sqrt(in_channels))
        params.update({"gs": gs, "bs": bs,
                       "ws": jnp.transpose(ws_t[:, :, 0, 0])})     # (Dc, Cin)
    else:
        w3_t = conv_w(ks[8], down_channels, hidden_channels, 1, 1)
        params["w3"] = w3_t[:, :, 0, 0]                            # (Dc, Hc)
        if in_channels != down_channels:
            gs, bs = bn(ks[9], ks[10], in_channels)
            ws_t = conv_w(ks[11], down_channels, in_channels, 1, 1)
            params.update({"gs": gs, "bs": bs, "ws": ws_t[:, :, 0, 0]})
    return params


# ---------------- pure-JAX reference (independent code path) ----------------
def _bn_relu_ref(x, gamma, beta):
    mu = jnp.mean(x, axis=(0, 1, 2), keepdims=True)
    var = jnp.mean((x - mu) ** 2, axis=(0, 1, 2), keepdims=True)
    return jnp.maximum((x - mu) / jnp.sqrt(var + EPS) * gamma + beta, 0.0)


def reference_forward(x_nchw, params, *, upsample):
    N, Cin, H, W = x_nchw.shape
    Dc = params["w3"].shape[0]
    x = jnp.transpose(x_nchw, (0, 2, 3, 1))
    a1 = _bn_relu_ref(x, params["g1"], params["b1"])
    h1 = a1 @ params["w1"].T
    a2 = _bn_relu_ref(h1, params["g2"], params["b2"])
    h2 = lax.conv_general_dilated(a2, params["w2_hwio"], (1, 1), "SAME",
                                  dimension_numbers=("NHWC", "HWIO", "NHWC"))
    a3 = _bn_relu_ref(h2, params["g3"], params["b3"])
    y = a3 @ params["w3"].T
    if upsample or (Cin != Dc):
        idn = _bn_relu_ref(x, params["gs"], params["bs"]) @ params["ws"].T
    else:
        idn = x
    out = y + idn
    if upsample:
        up = jnp.zeros((N, 2 * H, 2 * W, Dc), out.dtype)
        out = up.at[:, ::2, ::2, :].set(out)
    return jnp.transpose(out, (0, 3, 1, 2))


if __name__ == "__main__":
    key = jax.random.PRNGKey(0)
    kx, kp1, kp2, kp3 = jax.random.split(key, 4)

    N, H, W = 2, 16, 16
    configs = [
        dict(in_channels=8, hidden_channels=8, down_channels=16, upsample=False),  # down_scale branch
        dict(in_channels=8, hidden_channels=8, down_channels=8, upsample=False),   # plain identity branch
        dict(in_channels=8, hidden_channels=8, down_channels=16, upsample=True),   # upsample branch
    ]

    ok = True
    for cfg, kp in zip(configs, [kp1, kp2, kp3]):
        x = jax.random.normal(kx, (N, cfg["in_channels"], H, W), jnp.float32)
        params = init_params(kp, **cfg)
        ref = reference_forward(x, params, upsample=cfg["upsample"])
        ref_mag = float(jnp.max(jnp.abs(ref)))
        for cdt in (jnp.float32, jnp.bfloat16):
            out = decoder_bottleneck_forward(x, params, upsample=cfg["upsample"],
                                             compute_dtype=cdt)
            out = jax.block_until_ready(out)
            err = float(jnp.max(jnp.abs(out - ref)))
            # f32 path checks exact kernel logic; bf16 path allows MXU-operand
            # rounding (relative tolerance on the output magnitude).
            tol = 5e-3 if cdt == jnp.float32 else 0.05 + 0.05 * ref_mag
            if not (err < tol):
                ok = False
                print(f"mismatch cfg={cfg} dtype={cdt.__name__}: "
                      f"max abs err = {err} (tol {tol})")

    if ok:
        print("KERNEL_OK")
</pallas_src>

<mosaic_0001>
module attributes {stable_mosaic.version = 11 : i64} {
  func.func @_stats_kernel(%arg0: i32, %arg1: memref<1x8x256xf32, #tpu.memory_space<vmem>>, %arg2: memref<1x8x1xf32, #tpu.memory_space<vmem>>, %arg3: memref<1x8x1xf32, #tpu.memory_space<vmem>>) attributes {dimension_semantics = [#tpu.dimension_semantics<parallel>], iteration_bounds = array<i64: 2>, scalar_prefetch = 0 : i64, scratch_operands = 0 : i64, tpu.core_type = #tpu.core_type<tc>, window_params = [{transform_indices = @transform_0, window_bounds = array<i64: 1, 8, 256>}, {transform_indices = @transform_1, window_bounds = array<i64: 1, 8, 1>}, {transform_indices = @transform_2, window_bounds = array<i64: 1, 8, 1>}]} {
    %c0 = arith.constant 0 : index
    %c0_0 = arith.constant 0 : index
    %c0_1 = arith.constant 0 : index
    %0 = vector.load %arg1[%c0, %c0_0, %c0_1] : memref<1x8x256xf32, #tpu.memory_space<vmem>>, vector<1x8x256xf32>
    %1 = vector.shape_cast %0 : vector<1x8x256xf32> to vector<8x256xf32>
    %cst = arith.constant dense<0.000000e+00> : vector<8xf32>
    %2 = vector.multi_reduction <add>, %1, %cst [1] : vector<8x256xf32> to vector<8xf32>
    %3 = vector.shape_cast %2 : vector<8xf32> to vector<8x1xf32>
    %c0_2 = arith.constant 0 : index
    %c0_3 = arith.constant 0 : index
    %c0_4 = arith.constant 0 : index
    %4 = vector.load %arg2[%c0_2, %c0_3, %c0_4] : memref<1x8x1xf32, #tpu.memory_space<vmem>>, vector<1x8x1xf32>
    %5 = vector.shape_cast %4 : vector<1x8x1xf32> to vector<8x1xf32>
    %6 = vector.shape_cast %3 : vector<8x1xf32> to vector<1x8x1xf32>
    tpu.vector_store %arg2[%c0_2, %c0_3, %c0_4], %6 {strides = array<i32>} : memref<1x8x1xf32, #tpu.memory_space<vmem>>, vector<1x8x1xf32>,
    %7 = arith.mulf %1, %1 : vector<8x256xf32>
    %cst_5 = arith.constant dense<0.000000e+00> : vector<8xf32>
    %8 = vector.multi_reduction <add>, %7, %cst_5 [1] : vector<8x256xf32> to vector<8xf32>
    %9 = vector.shape_cast %8 : vector<8xf32> to vector<8x1xf32>
    %c0_6 = arith.constant 0 : index
    %c0_7 = arith.constant 0 : index
    %c0_8 = arith.constant 0 : index
    %10 = vector.load %arg3[%c0_6, %c0_7, %c0_8] : memref<1x8x1xf32, #tpu.memory_space<vmem>>, vector<1x8x1xf32>
    %11 = vector.shape_cast %10 : vector<1x8x1xf32> to vector<8x1xf32>
    %12 = vector.shape_cast %9 : vector<8x1xf32> to vector<1x8x1xf32>
    tpu.vector_store %arg3[%c0_6, %c0_7, %c0_8], %12 {strides = array<i32>} : memref<1x8x1xf32, #tpu.memory_space<vmem>>, vector<1x8x1xf32>,
    return
  }
  func.func @transform_0(%arg0: i32) -> (i32, i32, i32) {
    %c0_i32 = arith.constant 0 : i32
    %c0_i32_0 = arith.constant 0 : i32
    %c0_i32_1 = arith.constant 0 : i32
    return %arg0, %c0_i32, %c0_i32_0 : i32, i32, i32
  }
  func.func @transform_1(%arg0: i32) -> (i32, i32, i32) {
    %c0_i32 = arith.constant 0 : i32
    %c0_i32_0 = arith.constant 0 : i32
    %c0_i32_1 = arith.constant 0 : i32
    return %arg0, %c0_i32, %c0_i32_0 : i32, i32, i32
  }
  func.func @transform_2(%arg0: i32) -> (i32, i32, i32) {
    %c0_i32 = arith.constant 0 : i32
    %c0_i32_0 = arith.constant 0 : i32
    %c0_i32_1 = arith.constant 0 : i32
    return %arg0, %c0_i32, %c0_i32_0 : i32, i32, i32
  }
}

module attributes {stable_mosaic.version = 11 : i64} {
  func.func @_layer1_kernel(%arg0: i32, %arg1: memref<1x8x256xf32, #tpu.memory_space<vmem>>, %arg2: memref<8x1xf32, #tpu.memory_space<vmem>>, %arg3: memref<8x1xf32, #tpu.memory_space<vmem>>, %arg4: memref<8x8xf32, #tpu.memory_space<vmem>>, %arg5: memref<1x8x256xf32, #tpu.memory_space<vmem>>, %arg6: memref<1x8x1xf32, #tpu.memory_space<vmem>>, %arg7: memref<1x8x1xf32, #tpu.memory_space<vmem>>) attributes {dimension_semantics = [#tpu.dimension_semantics<parallel>], iteration_bounds = array<i64: 2>, scalar_prefetch = 0 : i64, scratch_operands = 0 : i64, tpu.core_type = #tpu.core_type<tc>, window_params = [{transform_indices = @transform_0, window_bounds = array<i64: 1, 8, 256>}, {pipeline_mode = #tpu.pipeline_mode<synchronous>, transform_indices = @transform_1, window_bounds = array<i64: 8, 1>}, {pipeline_mode = #tpu.pipeline_mode<synchronous>, transform_indices = @transform_2, window_bounds = array<i64: 8, 1>}, {pipeline_mode = #tpu.pipeline_mode<synchronous>, transform_indices = @transform_3, window_bounds = array<i64: 8, 8>}, {transform_indices = @transform_4, window_bounds = array<i64: 1, 8, 256>}, {transform_indices = @transform_5, window_bounds = array<i64: 1, 8, 1>}, {transform_indices = @transform_6, window_bounds = array<i64: 1, 8, 1>}]} {
    %c0 = arith.constant 0 : index
    %c0_0 = arith.constant 0 : index
    %c0_1 = arith.constant 0 : index
    %0 = vector.load %arg1[%c0, %c0_0, %c0_1] : memref<1x8x256xf32, #tpu.memory_space<vmem>>, vector<1x8x256xf32>
    %1 = vector.shape_cast %0 : vector<1x8x256xf32> to vector<8x256xf32>
    %c0_2 = arith.constant 0 : index
    %c0_3 = arith.constant 0 : index
    %2 = vector.load %arg2[%c0_2, %c0_3] : memref<8x1xf32, #tpu.memory_space<vmem>>, vector<8x1xf32>
    %3 = vector.broadcast %2 : vector<8x1xf32> to vector<8x256xf32>
    %4 = arith.mulf %1, %3 : vector<8x256xf32>
    %c0_4 = arith.constant 0 : index
    %c0_5 = arith.constant 0 : index
    %5 = vector.load %arg3[%c0_4, %c0_5] : memref<8x1xf32, #tpu.memory_space<vmem>>, vector<8x1xf32>
    %6 = vector.broadcast %5 : vector<8x1xf32> to vector<8x256xf32>
    %7 = arith.addf %4, %6 : vector<8x256xf32>
    %cst = arith.constant 0.000000e+00 : f32
    %8 = vector.broadcast %cst : f32 to vector<8x256xf32>
    %9 = arith.maximumf %7, %8 : vector<8x256xf32>
    %c0_6 = arith.constant 0 : index
    %c0_7 = arith.constant 0 : index
    %10 = vector.load %arg4[%c0_6, %c0_7] : memref<8x8xf32, #tpu.memory_space<vmem>>, vector<8x8xf32>
    %cst_8 = arith.constant dense<0.000000e+00> : vector<8x256xf32>
    %11 = tpu.matmul %10, %9, %cst_8 {dimension_numbers = #tpu.dot_dimension_numbers<[1], [0], [0], [1], [0, 0, 1, 1], [], []>} : vector<8x8xf32>, vector<8x256xf32>, vector<8x256xf32> -> vector<8x256xf32>
    %c0_9 = arith.constant 0 : index
    %c0_10 = arith.constant 0 : index
    %c0_11 = arith.constant 0 : index
    %12 = vector.load %arg5[%c0_9, %c0_10, %c0_11] : memref<1x8x256xf32, #tpu.memory_space<vmem>>, vector<1x8x256xf32>
    %13 = vector.shape_cast %12 : vector<1x8x256xf32> to vector<8x256xf32>
    %14 = vector.shape_cast %11 : vector<8x256xf32> to vector<1x8x256xf32>
    tpu.vector_store %arg5[%c0_9, %c0_10, %c0_11], %14 {strides = array<i32>} : memref<1x8x256xf32, #tpu.memory_space<vmem>>, vector<1x8x256xf32>,
    %cst_12 = arith.constant dense<0.000000e+00> : vector<8xf32>
    %15 = vector.multi_reduction <add>, %11, %cst_12 [1] : vector<8x256xf32> to vector<8xf32>
    %16 = vector.shape_cast %15 : vector<8xf32> to vector<8x1xf32>
    %c0_13 = arith.constant 0 : index
    %c0_14 = arith.constant 0 : index
    %c0_15 = arith.constant 0 : index
    %17 = vector.load %arg6[%c0_13, %c0_14, %c0_15] : memref<1x8x1xf32, #tpu.memory_space<vmem>>, vector<1x8x1xf32>
    %18 = vector.shape_cast %17 : vector<1x8x1xf32> to vector<8x1xf32>
    %19 = vector.shape_cast %16 : vector<8x1xf32> to vector<1x8x1xf32>
    tpu.vector_store %arg6[%c0_13, %c0_14, %c0_15], %19 {strides = array<i32>} : memref<1x8x1xf32, #tpu.memory_space<vmem>>, vector<1x8x1xf32>,
    %20 = arith.mulf %11, %11 : vector<8x256xf32>
    %cst_16 = arith.constant dense<0.000000e+00> : vector<8xf32>
    %21 = vector.multi_reduction <add>, %20, %cst_16 [1] : vector<8x256xf32> to vector<8xf32>
    %22 = vector.shape_cast %21 : vector<8xf32> to vector<8x1xf32>
    %c0_17 = arith.constant 0 : index
    %c0_18 = arith.constant 0 : index
    %c0_19 = arith.constant 0 : index
    %23 = vector.load %arg7[%c0_17, %c0_18, %c0_19] : memref<1x8x1xf32, #tpu.memory_space<vmem>>, vector<1x8x1xf32>
    %24 = vector.shape_cast %23 : vector<1x8x1xf32> to vector<8x1xf32>
    %25 = vector.shape_cast %22 : vector<8x1xf32> to vector<1x8x1xf32>
    tpu.vector_store %arg7[%c0_17, %c0_18, %c0_19], %25 {strides = array<i32>} : memref<1x8x1xf32, #tpu.memory_space<vmem>>, vector<1x8x1xf32>,
    return
  }
  func.func @transform_0(%arg0: i32) -> (i32, i32, i32) {
    %c0_i32 = arith.constant 0 : i32
    %c0_i32_0 = arith.constant 0 : i32
    %c0_i32_1 = arith.constant 0 : i32
    return %arg0, %c0_i32, %c0_i32_0 : i32, i32, i32
  }
  func.func @transform_1(%arg0: i32) -> (i32, i32) {
    %c0_i32 = arith.constant 0 : i32
    %c0_i32_0 = arith.constant 0 : i32
    %c0_i32_1 = arith.constant 0 : i32
    return %c0_i32, %c0_i32_0 : i32, i32
  }
  func.func @transform_2(%arg0: i32) -> (i32, i32) {
    %c0_i32 = arith.constant 0 : i32
    %c0_i32_0 = arith.constant 0 : i32
    %c0_i32_1 = arith.constant 0 : i32
    return %c0_i32, %c0_i32_0 : i32, i32
  }
  func.func @transform_3(%arg0: i32) -> (i32, i32) {
    %c0_i32 = arith.constant 0 : i32
    %c0_i32_0 = arith.constant 0 : i32
    %c0_i32_1 = arith.constant 0 : i32
    return %c0_i32, %c0_i32_0 : i32, i32
  }
  func.func @transform_4(%arg0: i32) -> (i32, i32, i32) {
    %c0_i32 = arith.constant 0 : i32
    %c0_i32_0 = arith.constant 0 : i32
    %c0_i32_1 = arith.constant 0 : i32
    return %arg0, %c0_i32, %c0_i32_0 : i32, i32, i32
  }
  func.func @transform_5(%arg0: i32) -> (i32, i32, i32) {
    %c0_i32 = arith.constant 0 : i32
    %c0_i32_0 = arith.constant 0 : i32
    %c0_i32_1 = arith.constant 0 : i32
    return %arg0, %c0_i32, %c0_i32_0 : i32, i32, i32
  }
  func.func @transform_6(%arg0: i32) -> (i32, i32, i32) {
    %c0_i32 = arith.constant 0 : i32
    %c0_i32_0 = arith.constant 0 : i32
    %c0_i32_1 = arith.constant 0 : i32
    return %arg0, %c0_i32, %c0_i32_0 : i32, i32, i32
  }
}

module attributes {stable_mosaic.version = 11 : i64} {
  func.func @_layer3_kernel(%arg0: i32, %arg1: memref<1x8x256xf32, #tpu.memory_space<vmem>>, %arg2: memref<8x1xf32, #tpu.memory_space<vmem>>, %arg3: memref<8x1xf32, #tpu.memory_space<vmem>>, %arg4: memref<16x8xf32, #tpu.memory_space<vmem>>, %arg5: memref<1x8x256xf32, #tpu.memory_space<vmem>>, %arg6: memref<8x1xf32, #tpu.memory_space<vmem>>, %arg7: memref<8x1xf32, #tpu.memory_space<vmem>>, %arg8: memref<16x8xf32, #tpu.memory_space<vmem>>, %arg9: memref<1x16x256xf32, #tpu.memory_space<vmem>>) attributes {dimension_semantics = [#tpu.dimension_semantics<parallel>], iteration_bounds = array<i64: 2>, scalar_prefetch = 0 : i64, scratch_operands = 0 : i64, tpu.core_type = #tpu.core_type<tc>, window_params = [{transform_indices = @transform_0, window_bounds = array<i64: 1, 8, 256>}, {pipeline_mode = #tpu.pipeline_mode<synchronous>, transform_indices = @transform_1, window_bounds = array<i64: 8, 1>}, {pipeline_mode = #tpu.pipeline_mode<synchronous>, transform_indices = @transform_2, window_bounds = array<i64: 8, 1>}, {pipeline_mode = #tpu.pipeline_mode<synchronous>, transform_indices = @transform_3, window_bounds = array<i64: 16, 8>}, {transform_indices = @transform_4, window_bounds = array<i64: 1, 8, 256>}, {pipeline_mode = #tpu.pipeline_mode<synchronous>, transform_indices = @transform_5, window_bounds = array<i64: 8, 1>}, {pipeline_mode = #tpu.pipeline_mode<synchronous>, transform_indices = @transform_6, window_bounds = array<i64: 8, 1>}, {pipeline_mode = #tpu.pipeline_mode<synchronous>, transform_indices = @transform_7, window_bounds = array<i64: 16, 8>}, {transform_indices = @transform_8, window_bounds = array<i64: 1, 16, 256>}]} {
    %c0 = arith.constant 0 : index
    %c0_0 = arith.constant 0 : index
    %c0_1 = arith.constant 0 : index
    %0 = vector.load %arg1[%c0, %c0_0, %c0_1] : memref<1x8x256xf32, #tpu.memory_space<vmem>>, vector<1x8x256xf32>
    %1 = vector.shape_cast %0 : vector<1x8x256xf32> to vector<8x256xf32>
    %c0_2 = arith.constant 0 : index
    %c0_3 = arith.constant 0 : index
    %2 = vector.load %arg2[%c0_2, %c0_3] : memref<8x1xf32, #tpu.memory_space<vmem>>, vector<8x1xf32>
    %3 = vector.broadcast %2 : vector<8x1xf32> to vector<8x256xf32>
    %4 = arith.mulf %1, %3 : vector<8x256xf32>
    %c0_4 = arith.constant 0 : index
    %c0_5 = arith.constant 0 : index
    %5 = vector.load %arg3[%c0_4, %c0_5] : memref<8x1xf32, #tpu.memory_space<vmem>>, vector<8x1xf32>
    %6 = vector.broadcast %5 : vector<8x1xf32> to vector<8x256xf32>
    %7 = arith.addf %4, %6 : vector<8x256xf32>
    %cst = arith.constant 0.000000e+00 : f32
    %8 = vector.broadcast %cst : f32 to vector<8x256xf32>
    %9 = arith.maximumf %7, %8 : vector<8x256xf32>
    %c0_6 = arith.constant 0 : index
    %c0_7 = arith.constant 0 : index
    %10 = vector.load %arg4[%c0_6, %c0_7] : memref<16x8xf32, #tpu.memory_space<vmem>>, vector<16x8xf32>
    %cst_8 = arith.constant dense<0.000000e+00> : vector<16x256xf32>
    %11 = tpu.matmul %10, %9, %cst_8 {dimension_numbers = #tpu.dot_dimension_numbers<[1], [0], [0], [1], [0, 0, 1, 1], [], []>} : vector<16x8xf32>, vector<8x256xf32>, vector<16x256xf32> -> vector<16x256xf32>
    %c0_9 = arith.constant 0 : index
    %c0_10 = arith.constant 0 : index
    %c0_11 = arith.constant 0 : index
    %12 = vector.load %arg5[%c0_9, %c0_10, %c0_11] : memref<1x8x256xf32, #tpu.memory_space<vmem>>, vector<1x8x256xf32>
    %13 = vector.shape_cast %12 : vector<1x8x256xf32> to vector<8x256xf32>
    %c0_12 = arith.constant 0 : index
    %c0_13 = arith.constant 0 : index
    %14 = vector.load %arg6[%c0_12, %c0_13] : memref<8x1xf32, #tpu.memory_space<vmem>>, vector<8x1xf32>
    %15 = vector.broadcast %14 : vector<8x1xf32> to vector<8x256xf32>
    %16 = arith.mulf %13, %15 : vector<8x256xf32>
    %c0_14 = arith.constant 0 : index
    %c0_15 = arith.constant 0 : index
    %17 = vector.load %arg7[%c0_14, %c0_15] : memref<8x1xf32, #tpu.memory_space<vmem>>, vector<8x1xf32>
    %18 = vector.broadcast %17 : vector<8x1xf32> to vector<8x256xf32>
    %19 = arith.addf %16, %18 : vector<8x256xf32>
    %cst_16 = arith.constant 0.000000e+00 : f32
    %20 = vector.broadcast %cst_16 : f32 to vector<8x256xf32>
    %21 = arith.maximumf %19, %20 : vector<8x256xf32>
    %c0_17 = arith.constant 0 : index
    %c0_18 = arith.constant 0 : index
    %22 = vector.load %arg8[%c0_17, %c0_18] : memref<16x8xf32, #tpu.memory_space<vmem>>, vector<16x8xf32>
    %cst_19 = arith.constant dense<0.000000e+00> : vector<16x256xf32>
    %23 = tpu.matmul %22, %21, %cst_19 {dimension_numbers = #tpu.dot_dimension_numbers<[1], [0], [0], [1], [0, 0, 1, 1], [], []>} : vector<16x8xf32>, vector<8x256xf32>, vector<16x256xf32> -> vector<16x256xf32>
    %24 = arith.addf %11, %23 : vector<16x256xf32>
    %c0_20 = arith.constant 0 : index
    %c0_21 = arith.constant 0 : index
    %c0_22 = arith.constant 0 : index
    %25 = vector.load %arg9[%c0_20, %c0_21, %c0_22] : memref<1x16x256xf32, #tpu.memory_space<vmem>>, vector<1x16x256xf32>
    %26 = vector.shape_cast %25 : vector<1x16x256xf32> to vector<16x256xf32>
    %27 = vector.shape_cast %24 : vector<16x256xf32> to vector<1x16x256xf32>
    tpu.vector_store %arg9[%c0_20, %c0_21, %c0_22], %27 {strides = array<i32>} : memref<1x16x256xf32, #tpu.memory_space<vmem>>, vector<1x16x256xf32>,
    return
  }
  func.func @transform_0(%arg0: i32) -> (i32, i32, i32) {
    %c0_i32 = arith.constant 0 : i32
    %c0_i32_0 = arith.constant 0 : i32
    %c0_i32_1 = arith.constant 0 : i32
    return %arg0, %c0_i32, %c0_i32_0 : i32, i32, i32
  }
  func.func @transform_1(%arg0: i32) -> (i32, i32) {
    %c0_i32 = arith.constant 0 : i32
    %c0_i32_0 = arith.constant 0 : i32
    %c0_i32_1 = arith.constant 0 : i32
    return %c0_i32, %c0_i32_0 : i32, i32
  }
  func.func @transform_2(%arg0: i32) -> (i32, i32) {
    %c0_i32 = arith.constant 0 : i32
    %c0_i32_0 = arith.constant 0 : i32
    %c0_i32_1 = arith.constant 0 : i32
    return %c0_i32, %c0_i32_0 : i32, i32
  }
  func.func @transform_3(%arg0: i32) -> (i32, i32) {
    %c0_i32 = arith.constant 0 : i32
    %c0_i32_0 = arith.constant 0 : i32
    %c0_i32_1 = arith.constant 0 : i32
    return %c0_i32, %c0_i32_0 : i32, i32
  }
  func.func @transform_4(%arg0: i32) -> (i32, i32, i32) {
    %c0_i32 = arith.constant 0 : i32
    %c0_i32_0 = arith.constant 0 : i32
    %c0_i32_1 = arith.constant 0 : i32
    return %arg0, %c0_i32, %c0_i32_0 : i32, i32, i32
  }
  func.func @transform_5(%arg0: i32) -> (i32, i32) {
    %c0_i32 = arith.constant 0 : i32
    %c0_i32_0 = arith.constant 0 : i32
    %c0_i32_1 = arith.constant 0 : i32
    return %c0_i32, %c0_i32_0 : i32, i32
  }
  func.func @transform_6(%arg0: i32) -> (i32, i32) {
    %c0_i32 = arith.constant 0 : i32
    %c0_i32_0 = arith.constant 0 : i32
    %c0_i32_1 = arith.constant 0 : i32
    return %c0_i32, %c0_i32_0 : i32, i32
  }
  func.func @transform_7(%arg0: i32) -> (i32, i32) {
    %c0_i32 = arith.constant 0 : i32
    %c0_i32_0 = arith.constant 0 : i32
    %c0_i32_1 = arith.constant 0 : i32
    return %c0_i32, %c0_i32_0 : i32, i32
  }
  func.func @transform_8(%arg0: i32) -> (i32, i32, i32) {
    %c0_i32 = arith.constant 0 : i32
    %c0_i32_0 = arith.constant 0 : i32
    %c0_i32_1 = arith.constant 0 : i32
    return %arg0, %c0_i32, %c0_i32_0 : i32, i32, i32
  }
}

module attributes {stable_mosaic.version = 11 : i64} {
  func.func @_conv3x3_kernel(%arg0: i32, %arg1: memref<1x8x256xf32, #tpu.memory_space<vmem>>, %arg2: memref<8x1xf32, #tpu.memory_space<vmem>>, %arg3: memref<8x1xf32, #tpu.memory_space<vmem>>, %arg4: memref<8x72xf32, #tpu.memory_space<vmem>>, %arg5: memref<9x1x256xf32, #tpu.memory_space<vmem>>, %arg6: memref<1x8x256xf32, #tpu.memory_space<vmem>>, %arg7: memref<1x8x1xf32, #tpu.memory_space<vmem>>, %arg8: memref<1x8x1xf32, #tpu.memory_space<vmem>>) attributes {dimension_semantics = [#tpu.dimension_semantics<parallel>], iteration_bounds = array<i64: 2>, scalar_prefetch = 0 : i64, scratch_operands = 0 : i64, tpu.core_type = #tpu.core_type<tc>, window_params = [{transform_indices = @transform_0, window_bounds = array<i64: 1, 8, 256>}, {pipeline_mode = #tpu.pipeline_mode<synchronous>, transform_indices = @transform_1, window_bounds = array<i64: 8, 1>}, {pipeline_mode = #tpu.pipeline_mode<synchronous>, transform_indices = @transform_2, window_bounds = array<i64: 8, 1>}, {pipeline_mode = #tpu.pipeline_mode<synchronous>, transform_indices = @transform_3, window_bounds = array<i64: 8, 72>}, {pipeline_mode = #tpu.pipeline_mode<synchronous>, transform_indices = @transform_4, window_bounds = array<i64: 9, 1, 256>}, {transform_indices = @transform_5, window_bounds = array<i64: 1, 8, 256>}, {transform_indices = @transform_6, window_bounds = array<i64: 1, 8, 1>}, {transform_indices = @transform_7, window_bounds = array<i64: 1, 8, 1>}]} {
    %c0 = arith.constant 0 : index
    %c0_0 = arith.constant 0 : index
    %c0_1 = arith.constant 0 : index
    %0 = vector.load %arg1[%c0, %c0_0, %c0_1] : memref<1x8x256xf32, #tpu.memory_space<vmem>>, vector<1x8x256xf32>
    %1 = vector.shape_cast %0 : vector<1x8x256xf32> to vector<8x256xf32>
    %c0_2 = arith.constant 0 : index
    %c0_3 = arith.constant 0 : index
    %2 = vector.load %arg2[%c0_2, %c0_3] : memref<8x1xf32, #tpu.memory_space<vmem>>, vector<8x1xf32>
    %3 = vector.broadcast %2 : vector<8x1xf32> to vector<8x256xf32>
    %4 = arith.mulf %1, %3 : vector<8x256xf32>
    %c0_4 = arith.constant 0 : index
    %c0_5 = arith.constant 0 : index
    %5 = vector.load %arg3[%c0_4, %c0_5] : memref<8x1xf32, #tpu.memory_space<vmem>>, vector<8x1xf32>
    %6 = vector.broadcast %5 : vector<8x1xf32> to vector<8x256xf32>
    %7 = arith.addf %4, %6 : vector<8x256xf32>
    %cst = arith.constant 0.000000e+00 : f32
    %8 = vector.broadcast %cst : f32 to vector<8x256xf32>
    %9 = arith.maximumf %7, %8 : vector<8x256xf32>
    %c17_i32 = arith.constant 17 : i32
    %10 = tpu.dynamic_rotate %9 by %c17_i32 dim 1 : vector<8x256xf32>, i32 -> vector<8x256xf32>
    %c0_6 = arith.constant 0 : index
    %c0_7 = arith.constant 0 : index
    %c0_8 = arith.constant 0 : index
    %11 = vector.load %arg5[%c0_6, %c0_7, %c0_8] : memref<9x1x256xf32, #tpu.memory_space<vmem>>, vector<1x1x256xf32>
    %12 = vector.shape_cast %11 : vector<1x1x256xf32> to vector<1x256xf32>
    %13 = vector.broadcast %12 : vector<1x256xf32> to vector<8x256xf32>
    %14 = arith.mulf %10, %13 : vector<8x256xf32>
    %c16_i32 = arith.constant 16 : i32
    %15 = tpu.dynamic_rotate %9 by %c16_i32 dim 1 : vector<8x256xf32>, i32 -> vector<8x256xf32>
    %c1 = arith.constant 1 : index
    %c0_9 = arith.constant 0 : index
    %c0_10 = arith.constant 0 : index
    %16 = vector.load %arg5[%c1, %c0_9, %c0_10] : memref<9x1x256xf32, #tpu.memory_space<vmem>>, vector<1x1x256xf32>
    %17 = vector.shape_cast %16 : vector<1x1x256xf32> to vector<1x256xf32>
    %18 = vector.broadcast %17 : vector<1x256xf32> to vector<8x256xf32>
    %19 = arith.mulf %15, %18 : vector<8x256xf32>
    %c15_i32 = arith.constant 15 : i32
    %20 = tpu.dynamic_rotate %9 by %c15_i32 dim 1 : vector<8x256xf32>, i32 -> vector<8x256xf32>
    %c2 = arith.constant 2 : index
    %c0_11 = arith.constant 0 : index
    %c0_12 = arith.constant 0 : index
    %21 = vector.load %arg5[%c2, %c0_11, %c0_12] : memref<9x1x256xf32, #tpu.memory_space<vmem>>, vector<1x1x256xf32>
    %22 = vector.shape_cast %21 : vector<1x1x256xf32> to vector<1x256xf32>
    %23 = vector.broadcast %22 : vector<1x256xf32> to vector<8x256xf32>
    %24 = arith.mulf %20, %23 : vector<8x256xf32>
    %c1_i32 = arith.constant 1 : i32
    %25 = tpu.dynamic_rotate %9 by %c1_i32 dim 1 : vector<8x256xf32>, i32 -> vector<8x256xf32>
    %c3 = arith.constant 3 : index
    %c0_13 = arith.constant 0 : index
    %c0_14 = arith.constant 0 : index
    %26 = vector.load %arg5[%c3, %c0_13, %c0_14] : memref<9x1x256xf32, #tpu.memory_space<vmem>>, vector<1x1x256xf32>
    %27 = vector.shape_cast %26 : vector<1x1x256xf32> to vector<1x256xf32>
    %28 = vector.broadcast %27 : vector<1x256xf32> to vector<8x256xf32>
    %29 = arith.mulf %25, %28 : vector<8x256xf32>
    %c4 = arith.constant 4 : index
    %c0_15 = arith.constant 0 : index
    %c0_16 = arith.constant 0 : index
    %30 = vector.load %arg5[%c4, %c0_15, %c0_16] : memref<9x1x256xf32, #tpu.memory_space<vmem>>, vector<1x1x256xf32>
    %31 = vector.shape_cast %30 : vector<1x1x256xf32> to vector<1x256xf32>
    %32 = vector.broadcast %31 : vector<1x256xf32> to vector<8x256xf32>
    %33 = arith.mulf %9, %32 : vector<8x256xf32>
    %c255_i32 = arith.constant 255 : i32
    %34 = tpu.dynamic_rotate %9 by %c255_i32 dim 1 : vector<8x256xf32>, i32 -> vector<8x256xf32>
    %c5 = arith.constant 5 : index
    %c0_17 = arith.constant 0 : index
    %c0_18 = arith.constant 0 : index
    %35 = vector.load %arg5[%c5, %c0_17, %c0_18] : memref<9x1x256xf32, #tpu.memory_space<vmem>>, vector<1x1x256xf32>
    %36 = vector.shape_cast %35 : vector<1x1x256xf32> to vector<1x256xf32>
    %37 = vector.broadcast %36 : vector<1x256xf32> to vector<8x256xf32>
    %38 = arith.mulf %34, %37 : vector<8x256xf32>
    %c241_i32 = arith.constant 241 : i32
    %39 = tpu.dynamic_rotate %9 by %c241_i32 dim 1 : vector<8x256xf32>, i32 -> vector<8x256xf32>
    %c6 = arith.constant 6 : index
    %c0_19 = arith.constant 0 : index
    %c0_20 = arith.constant 0 : index
    %40 = vector.load %arg5[%c6, %c0_19, %c0_20] : memref<9x1x256xf32, #tpu.memory_space<vmem>>, vector<1x1x256xf32>
    %41 = vector.shape_cast %40 : vector<1x1x256xf32> to vector<1x256xf32>
    %42 = vector.broadcast %41 : vector<1x256xf32> to vector<8x256xf32>
    %43 = arith.mulf %39, %42 : vector<8x256xf32>
    %c240_i32 = arith.constant 240 : i32
    %44 = tpu.dynamic_rotate %9 by %c240_i32 dim 1 : vector<8x256xf32>, i32 -> vector<8x256xf32>
    %c7 = arith.constant 7 : index
    %c0_21 = arith.constant 0 : index
    %c0_22 = arith.constant 0 : index
    %45 = vector.load %arg5[%c7, %c0_21, %c0_22] : memref<9x1x256xf32, #tpu.memory_space<vmem>>, vector<1x1x256xf32>
    %46 = vector.shape_cast %45 : vector<1x1x256xf32> to vector<1x256xf32>
    %47 = vector.broadcast %46 : vector<1x256xf32> to vector<8x256xf32>
    %48 = arith.mulf %44, %47 : vector<8x256xf32>
    %c239_i32 = arith.constant 239 : i32
    %49 = tpu.dynamic_rotate %9 by %c239_i32 dim 1 : vector<8x256xf32>, i32 -> vector<8x256xf32>
    %c8 = arith.constant 8 : index
    %c0_23 = arith.constant 0 : index
    %c0_24 = arith.constant 0 : index
    %50 = vector.load %arg5[%c8, %c0_23, %c0_24] : memref<9x1x256xf32, #tpu.memory_space<vmem>>, vector<1x1x256xf32>
    %51 = vector.shape_cast %50 : vector<1x1x256xf32> to vector<1x256xf32>
    %52 = vector.broadcast %51 : vector<1x256xf32> to vector<8x256xf32>
    %53 = arith.mulf %49, %52 : vector<8x256xf32>
    %54 = tpu.concatenate %14, %19, %24, %29, %33, %38, %43, %48, %53 in 0 : vector<8x256xf32>, vector<8x256xf32>, vector<8x256xf32>, vector<8x256xf32>, vector<8x256xf32>, vector<8x256xf32>, vector<8x256xf32>, vector<8x256xf32>, vector<8x256xf32> -> vector<72x256xf32>
    %c0_25 = arith.constant 0 : index
    %c0_26 = arith.constant 0 : index
    %55 = vector.load %arg4[%c0_25, %c0_26] : memref<8x72xf32, #tpu.memory_space<vmem>>, vector<8x72xf32>
    %cst_27 = arith.constant dense<0.000000e+00> : vector<8x256xf32>
    %56 = tpu.matmul %55, %54, %cst_27 {dimension_numbers = #tpu.dot_dimension_numbers<[1], [0], [0], [1], [0, 0, 1, 1], [], []>} : vector<8x72xf32>, vector<72x256xf32>, vector<8x256xf32> -> vector<8x256xf32>
    %c0_28 = arith.constant 0 : index
    %c0_29 = arith.constant 0 : index
    %c0_30 = arith.constant 0 : index
    %57 = vector.load %arg6[%c0_28, %c0_29, %c0_30] : memref<1x8x256xf32, #tpu.memory_space<vmem>>, vector<1x8x256xf32>
    %58 = vector.shape_cast %57 : vector<1x8x256xf32> to vector<8x256xf32>
    %59 = vector.shape_cast %56 : vector<8x256xf32> to vector<1x8x256xf32>
    tpu.vector_store %arg6[%c0_28, %c0_29, %c0_30], %59 {strides = array<i32>} : memref<1x8x256xf32, #tpu.memory_space<vmem>>, vector<1x8x256xf32>,
    %cst_31 = arith.constant dense<0.000000e+00> : vector<8xf32>
    %60 = vector.multi_reduction <add>, %56, %cst_31 [1] : vector<8x256xf32> to vector<8xf32>
    %61 = vector.shape_cast %60 : vector<8xf32> to vector<8x1xf32>
    %c0_32 = arith.constant 0 : index
    %c0_33 = arith.constant 0 : index
    %c0_34 = arith.constant 0 : index
    %62 = vector.load %arg7[%c0_32, %c0_33, %c0_34] : memref<1x8x1xf32, #tpu.memory_space<vmem>>, vector<1x8x1xf32>
    %63 = vector.shape_cast %62 : vector<1x8x1xf32> to vector<8x1xf32>
    %64 = vector.shape_cast %61 : vector<8x1xf32> to vector<1x8x1xf32>
    tpu.vector_store %arg7[%c0_32, %c0_33, %c0_34], %64 {strides = array<i32>} : memref<1x8x1xf32, #tpu.memory_space<vmem>>, vector<1x8x1xf32>,
    %65 = arith.mulf %56, %56 : vector<8x256xf32>
    %cst_35 = arith.constant dense<0.000000e+00> : vector<8xf32>
    %66 = vector.multi_reduction <add>, %65, %cst_35 [1] : vector<8x256xf32> to vector<8xf32>
    %67 = vector.shape_cast %66 : vector<8xf32> to vector<8x1xf32>
    %c0_36 = arith.constant 0 : index
    %c0_37 = arith.constant 0 : index
    %c0_38 = arith.constant 0 : index
    %68 = vector.load %arg8[%c0_36, %c0_37, %c0_38] : memref<1x8x1xf32, #tpu.memory_space<vmem>>, vector<1x8x1xf32>
    %69 = vector.shape_cast %68 : vector<1x8x1xf32> to vector<8x1xf32>
    %70 = vector.shape_cast %67 : vector<8x1xf32> to vector<1x8x1xf32>
    tpu.vector_store %arg8[%c0_36, %c0_37, %c0_38], %70 {strides = array<i32>} : memref<1x8x1xf32, #tpu.memory_space<vmem>>, vector<1x8x1xf32>,
    return
  }
  func.func @transform_0(%arg0: i32) -> (i32, i32, i32) {
    %c0_i32 = arith.constant 0 : i32
    %c0_i32_0 = arith.constant 0 : i32
    %c0_i32_1 = arith.constant 0 : i32
    return %arg0, %c0_i32, %c0_i32_0 : i32, i32, i32
  }
  func.func @transform_1(%arg0: i32) -> (i32, i32) {
    %c0_i32 = arith.constant 0 : i32
    %c0_i32_0 = arith.constant 0 : i32
    %c0_i32_1 = arith.constant 0 : i32
    return %c0_i32, %c0_i32_0 : i32, i32
  }
  func.func @transform_2(%arg0: i32) -> (i32, i32) {
    %c0_i32 = arith.constant 0 : i32
    %c0_i32_0 = arith.constant 0 : i32
    %c0_i32_1 = arith.constant 0 : i32
    return %c0_i32, %c0_i32_0 : i32, i32
  }
  func.func @transform_3(%arg0: i32) -> (i32, i32) {
    %c0_i32 = arith.constant 0 : i32
    %c0_i32_0 = arith.constant 0 : i32
    %c0_i32_1 = arith.constant 0 : i32
    return %c0_i32, %c0_i32_0 : i32, i32
  }
  func.func @transform_4(%arg0: i32) -> (i32, i32, i32) {
    %c0_i32 = arith.constant 0 : i32
    %c0_i32_0 = arith.constant 0 : i32
    %c0_i32_1 = arith.constant 0 : i32
    %c0_i32_2 = arith.constant 0 : i32
    return %c0_i32, %c0_i32_0, %c0_i32_1 : i32, i32, i32
  }
  func.func @transform_5(%arg0: i32) -> (i32, i32, i32) {
    %c0_i32 = arith.constant 0 : i32
    %c0_i32_0 = arith.constant 0 : i32
    %c0_i32_1 = arith.constant 0 : i32
    return %arg0, %c0_i32, %c0_i32_0 : i32, i32, i32
  }
  func.func @transform_6(%arg0: i32) -> (i32, i32, i32) {
    %c0_i32 = arith.constant 0 : i32
    %c0_i32_0 = arith.constant 0 : i32
    %c0_i32_1 = arith.constant 0 : i32
    return %arg0, %c0_i32, %c0_i32_0 : i32, i32, i32
  }
  func.func @transform_7(%arg0: i32) -> (i32, i32, i32) {
    %c0_i32 = arith.constant 0 : i32
    %c0_i32_0 = arith.constant 0 : i32
    %c0_i32_1 = arith.constant 0 : i32
    return %arg0, %c0_i32, %c0_i32_0 : i32, i32, i32
  }
}

</mosaic_0001>

<llo_original>
// kernel: decoder_bottleneck_forward.4
$region0: #{decoder_bottleneck_forward.4}
  #allocation0 [shape = 'u32[]', space=smem, size = 0x4, offset = 0x4, fixed_abs, tag = 'smem constant byte address 0x4 - core index']
  #allocation1 [shape = 'u32[144,128]{1,0:T(1,128)}', space=vmem, size = 0x12000, scoped, tag = 'internal scratch']
  %s0 = inlined_call_operand.vmem [shape: f32[2,8,256], index: 0, kind: input, shape index: {}]
  %s1 = inlined_call_operand.vmem [shape: f32[2,8,1], index: 1, kind: output, shape index: {0}]
  %s2 = inlined_call_operand.vmem [shape: f32[2,8,1], index: 2, kind: output, shape index: {1}]
  %3 = xla_tuple %s1, %s2
  %s4 = sld [smem:[#allocation0]]
  $region45: #{decoder_bottleneck_forward.4} parent=0
    _
  %s6 = ssub.s32 1, %s4
  %s7 = scalar_select 0, %s6, %s4
  loop: start=0, step=1, limit=4
  $region2: #{decoder_bottleneck_forward.4} parent=0 // loop_pre_header
    _
  $region3: #{decoder_bottleneck_forward.4} parent=0 // loop_header
    %s9 = sphi 0, %s13
    %p10 = scmp.ge.s32.totalorder %s9, 4
    %s19 = sphi 0, %s21
    %s22 = sphi 0, %s19
    %s23 = sphi 0, %s22
    %s39 = sphi 0, %s23
    %s45 = sphi 0, %s47
    %s48 = sphi 0, %s45
    %s49 = sphi 0, %s48
    %s65 = sphi 0, %s49
    %s71 = sphi 0, %s73
    %s74 = sphi 0, %s71
    %s75 = sphi 0, %s74
    %s91 = sphi 0, %s75
  $region4: #{decoder_bottleneck_forward.4} parent=0 // loop_header_branch
    %12 = sbr.rel (%p10) target = $region8
  $region5: #{decoder_bottleneck_forward.4} parent=0 // loop_body
    %s14 = ssub.s32 %s9, 1
    %s15 = ssub.s32 %s9, 2
    %s16 = sadd.s32 %s9, 1
    %s17 = ssub.s32 %s9, %s16
    %p18 = scmp.eq.s32.totalorder %s17, 0
    %s20 = sadd.s32 %s19, 1
    %s21 = scalar_select %p18, %s19, %s20
    %p24 = pneg %p18
    %p25 = scmp.eq.s32.totalorder %s9, 1
    %p26 = por %p24, %p25
    %p27 = scmp.ne.s32.totalorder %s19, %s22
    %p28 = scmp.eq.s32.totalorder %s9, 0
    %p29 = por %p27, %p28
    %p30 = scmp.ne.s32.totalorder %s19, %s22
    %p31 = scmp.eq.s32.totalorder %s14, 1
    %p32 = por %p30, %p31
    %p33 = scmp.ne.s32.totalorder %s22, %s23
    %p34 = scmp.eq.s32.totalorder %s14, 0
    %p35 = por %p33, %p34
    %p36 = scmp.ne.s32.totalorder %s22, %s23
    %p37 = scmp.eq.s32.totalorder %s15, 1
    %p38 = por %p36, %p37
    %p40 = scmp.ne.s32.totalorder %s23, %s39
    %p41 = scmp.eq.s32.totalorder %s15, 0
    %p42 = por %p40, %p41
    %s43 = ssub.s32 %s9, %s16
    %p44 = scmp.eq.s32.totalorder %s43, 0
    %s46 = sadd.s32 %s45, 1
    %s47 = scalar_select %p44, %s45, %s46
    %p50 = pneg %p44
    %p51 = scmp.eq.s32.totalorder %s9, 1
    %p52 = por %p50, %p51
    %p53 = scmp.ne.s32.totalorder %s45, %s48
    %p54 = scmp.eq.s32.totalorder %s9, 0
    %p55 = por %p53, %p54
    %p56 = scmp.ne.s32.totalorder %s45, %s48
    %p57 = scmp.eq.s32.totalorder %s14, 1
    %p58 = por %p56, %p57
    %p59 = scmp.ne.s32.totalorder %s48, %s49
    %p60 = scmp.eq.s32.totalorder %s14, 0
    %p61 = por %p59, %p60
    %p62 = scmp.ne.s32.totalorder %s48, %s49
    %p63 = scmp.eq.s32.totalorder %s15, 1
    %p64 = por %p62, %p63
    %p66 = scmp.ne.s32.totalorder %s49, %s65
    %p67 = scmp.eq.s32.totalorder %s15, 0
    %p68 = por %p66, %p67
    %s69 = ssub.s32 %s9, %s16
    %p70 = scmp.eq.s32.totalorder %s69, 0
    %s72 = sadd.s32 %s71, 1
    %s73 = scalar_select %p70, %s71, %s72
    %p76 = pneg %p70
    %p77 = scmp.eq.s32.totalorder %s9, 1
    %p78 = por %p76, %p77
    %p79 = scmp.ne.s32.totalorder %s71, %s74
    %p80 = scmp.eq.s32.totalorder %s9, 0
    %p81 = por %p79, %p80
    %p82 = scmp.ne.s32.totalorder %s71, %s74
    %p83 = scmp.eq.s32.totalorder %s14, 1
    %p84 = por %p82, %p83
    %p85 = scmp.ne.s32.totalorder %s74, %s75
    %p86 = scmp.eq.s32.totalorder %s14, 0
    %p87 = por %p85, %p86
    %p88 = scmp.ne.s32.totalorder %s74, %s75
    %p89 = scmp.eq.s32.totalorder %s15, 1
    %p90 = por %p88, %p89
    %p92 = scmp.ne.s32.totalorder %s75, %s91
    %p93 = scmp.eq.s32.totalorder %s15, 0
    %p94 = por %p92, %p93
    %p95 = scmp.le.s32.totalorder 1, %s9
    %p96 = scmp.lt.s32.totalorder %s9, 3
    %p97 = pnand %p95, %p96
    %p98 = pneg %p97
    // Predicated region
    $region9: #{decoder_bottleneck_forward.4} parent=5 // pred_check
      _
    $region10: #{decoder_bottleneck_forward.4} parent=5 // pred_check_branch
      %100 = sbr.rel (%p97) target = $region12
    $region11: #{decoder_bottleneck_forward.4} parent=5 // pred_region
      %s101 = ssub.s32 %s9, 1
    $region12: #{decoder_bottleneck_forward.4} parent=5 // pred_fallthru
      _
    %p102 = scmp.lt.s32.totalorder %s9, 2
    // Predicated region
    $region13: #{decoder_bottleneck_forward.4} parent=5 // pred_check
      %p103 = pneg %p102
    $region14: #{decoder_bottleneck_forward.4} parent=5 // pred_check_branch
      %105 = sbr.rel (%p103) target = $region16
    $region15: #{decoder_bottleneck_forward.4} parent=5 // pred_region
      // Predicated region
      $region17: #{decoder_bottleneck_forward.4} parent=15 // pred_check
        %p106 = pneg %p29
      $region18: #{decoder_bottleneck_forward.4} parent=15 // pred_check_branch
        %108 = sbr.rel (%p106) target = $region20
      $region19: #{decoder_bottleneck_forward.4} parent=15 // pred_region
        %p109 = scmp.lt.s32.totalorder %s9, 1
        %s110 = scalar_select %p109, %s9, 1
        %s111 = smul.addr %s110, 2
        %s112 = smul.addr %s111, 8
        %s113 = scalar_lea.vmem %s0, %s112
      $region20: #{decoder_bottleneck_forward.4} parent=15 // pred_fallthru
        _
    $region16: #{decoder_bottleneck_forward.4} parent=5 // pred_fallthru
      _
    %p114 = scmp.le.s32.totalorder 1, %s9
    %p115 = scmp.lt.s32.totalorder %s9, 3
    %p116 = pnand %p114, %p115
    %p117 = pneg %p116
    // Predicated region
    $region21: #{decoder_bottleneck_forward.4} parent=5 // pred_check
      _
    $region22: #{decoder_bottleneck_forward.4} parent=5 // pred_check_branch
      %119 = sbr.rel (%p116) target = $region24
    $region23: #{decoder_bottleneck_forward.4} parent=5 // pred_region
      %s120 = ssub.s32 %s9, 1
      %p121 = scmp.lt.s32.totalorder %s14, 1
      %s122 = scalar_select %p121, %s14, 1
      %s123 = smul.addr %s122, 2
      %s124 = smul.addr %s123, 8
      %s125 = scalar_lea.vmem %s0, %s124
      %p126 = pneg %p35
      %p127 = pneg %p32
      %p128 = pneg %p61
      %p129 = pneg %p58
      %p130 = scmp.lt.s32.totalorder %s14, 1
      %s131 = scalar_select %p130, %s14, 1
      %s132 = smul.addr %s131, 8
      %s133 = scalar_lea.vmem %s1, %s132
      %p134 = pneg %p87
      %p135 = pneg %p84
      %p136 = scmp.lt.s32.totalorder %s14, 1
      %s137 = scalar_select %p136, %s14, 1
      %s138 = smul.addr %s137, 8
      %s139 = scalar_lea.vmem %s2, %s138
      %p140 = scmp.lt.s32.totalorder %s14, 1
      %s141 = scalar_select %p140, %s14, 1
      %s142 = smul.addr %s141, 2
      %s143 = smul.addr %s142, 8
      %s144 = scalar_lea.vmem %s0, %s143
      %p145 = scmp.lt.s32.totalorder %s14, 1
      %s146 = scalar_select %p145, %s14, 1
      %s147 = smul.addr %s146, 8
      %s148 = scalar_lea.vmem %s1, %s147
      %p149 = scmp.lt.s32.totalorder %s14, 1
      %s150 = scalar_select %p149, %s14, 1
      %s151 = smul.addr %s150, 8
      %s152 = scalar_lea.vmem %s2, %s151
      %v153 = vld [vmem:[%s144] sm:$0xff]
      %v154 = vld [vmem:[%s144 + $0x8] sm:$0xff]
      %v155 = vadd.f32 %v153, %v154
      %156 = vadd.xlane.f32.xlu0 %v155
      %v157 = vpop.xlane.xlu0 %156
      %vm158 = vcmask 7168
      %159 = vst.msk [vmem:[%s148] sm:$0xff] %vm158, %v157
      %v160 = vmul.f32 %v153, %v153
      %v161 = vmul.f32 %v154, %v154
      %v162 = vadd.f32 %v160, %v161
      %163 = vadd.xlane.f32.xlu0 %v162
      %v164 = vpop.xlane.xlu0 %163
      %165 = vst.msk [vmem:[%s152] sm:$0xff] %vm158, %v164
      %p166 = scmp.lt.s32.totalorder %s14, 1
      %s167 = scalar_select %p166, %s14, 1
      %s168 = smul.addr %s167, 8
      %s169 = scalar_lea.vmem %s1, %s168
      %p170 = scmp.lt.s32.totalorder %s14, 1
      %s171 = scalar_select %p170, %s14, 1
      %s172 = smul.addr %s171, 8
      %s173 = scalar_lea.vmem %s2, %s172
      // Predicated region
      $region25: #{decoder_bottleneck_forward.4} parent=23 // pred_check
        %p174 = pneg %p58
      $region26: #{decoder_bottleneck_forward.4} parent=23 // pred_check_branch
        %176 = sbr.rel (%p174) target = $region28
      $region27: #{decoder_bottleneck_forward.4} parent=23 // pred_region
        _
      $region28: #{decoder_bottleneck_forward.4} parent=23 // pred_fallthru
        _
      // Predicated region
      $region29: #{decoder_bottleneck_forward.4} parent=23 // pred_check
        %p177 = pneg %p84
      $region30: #{decoder_bottleneck_forward.4} parent=23 // pred_check_branch
        %179 = sbr.rel (%p177) target = $region32
      $region31: #{decoder_bottleneck_forward.4} parent=23 // pred_region
        _
      $region32: #{decoder_bottleneck_forward.4} parent=23 // pred_fallthru
        _
    $region24: #{decoder_bottleneck_forward.4} parent=5 // pred_fallthru
      _
    %p180 = scmp.le.s32.totalorder 2, %s9
    // Predicated region
    $region33: #{decoder_bottleneck_forward.4} parent=5 // pred_check
      %p181 = pneg %p180
    $region34: #{decoder_bottleneck_forward.4} parent=5 // pred_check_branch
      %183 = sbr.rel (%p181) target = $region36
    $region35: #{decoder_bottleneck_forward.4} parent=5 // pred_region
      %s184 = ssub.s32 %s9, 2
      // Predicated region
      $region37: #{decoder_bottleneck_forward.4} parent=35 // pred_check
        %p185 = pneg %p64
      $region38: #{decoder_bottleneck_forward.4} parent=35 // pred_check_branch
        %187 = sbr.rel (%p185) target = $region40
      $region39: #{decoder_bottleneck_forward.4} parent=35 // pred_region
        %p188 = scmp.lt.s32.totalorder %s15, 1
        %s189 = scalar_select %p188, %s15, 1
        %s190 = smul.addr %s189, 8
        %s191 = scalar_lea.vmem %s1, %s190
      $region40: #{decoder_bottleneck_forward.4} parent=35 // pred_fallthru
        _
      // Predicated region
      $region41: #{decoder_bottleneck_forward.4} parent=35 // pred_check
        %p192 = pneg %p90
      $region42: #{decoder_bottleneck_forward.4} parent=35 // pred_check_branch
        %194 = sbr.rel (%p192) target = $region44
      $region43: #{decoder_bottleneck_forward.4} parent=35 // pred_region
        %p195 = scmp.lt.s32.totalorder %s15, 1
        %s196 = scalar_select %p195, %s15, 1
        %s197 = smul.addr %s196, 8
        %s198 = scalar_lea.vmem %s2, %s197
      $region44: #{decoder_bottleneck_forward.4} parent=35 // pred_fallthru
        _
    $region36: #{decoder_bottleneck_forward.4} parent=5 // pred_fallthru
      _
  $region6: #{decoder_bottleneck_forward.4} parent=0 // loop_footer
    %s13 = sadd.s32 1, %s9
  $region7: #{decoder_bottleneck_forward.4} parent=0 // loop_footer_branch
    %8 = sbr.rel target = $region3
  $region8: #{decoder_bottleneck_forward.4} parent=0 // loop_exit
    _

// kernel: decoder_bottleneck_forward.5
$region0: #{decoder_bottleneck_forward.5}
  #allocation0 [shape = 'u32[]', space=smem, size = 0x4, offset = 0x4, fixed_abs, tag = 'smem constant byte address 0x4 - core index']
  #allocation1 [shape = 'u32[144,128]{1,0:T(1,128)}', space=vmem, size = 0x12000, scoped, tag = 'internal scratch']
  %s0 = inlined_call_operand.vmem [shape: f32[2,8,256], index: 0, kind: input, shape index: {}]
  %s1 = inlined_call_operand.vmem [shape: f32[8,1], index: 1, kind: input, shape index: {}]
  %s2 = inlined_call_operand.vmem [shape: f32[8,1], index: 2, kind: input, shape index: {}]
  %s3 = inlined_call_operand.vmem [shape: f32[8,8], index: 3, kind: input, shape index: {}]
  %s4 = inlined_call_operand.vmem [shape: f32[2,8,256], index: 4, kind: output, shape index: {0}]
  %s5 = inlined_call_operand.vmem [shape: f32[2,8,1], index: 5, kind: output, shape index: {1}]
  %s6 = inlined_call_operand.vmem [shape: f32[2,8,1], index: 6, kind: output, shape index: {2}]
  %7 = xla_tuple %s4, %s5, %s6
  %s8 = sld [smem:[#allocation0]]
  $region65: #{decoder_bottleneck_forward.5} parent=0
    _
  %s10 = ssub.s32 1, %s8
  %s11 = scalar_select 0, %s10, %s8
  loop: start=0, step=1, limit=4
  $region2: #{decoder_bottleneck_forward.5} parent=0 // loop_pre_header
    _
  $region3: #{decoder_bottleneck_forward.5} parent=0 // loop_header
    %s13 = sphi 0, %s17
    %p14 = scmp.ge.s32.totalorder %s13, 4
    %s23 = sphi 0, %s25
    %s26 = sphi 0, %s23
    %s27 = sphi 0, %s26
    %s43 = sphi 0, %s27
    %s47 = sphi 0, %s47
    %s49 = sphi 0, %s47
    %s50 = sphi 0, %s49
    %s64 = sphi 0, %s50
    %s68 = sphi 0, %s68
    %s70 = sphi 0, %s68
    %s71 = sphi 0, %s70
    %s85 = sphi 0, %s71
    %s89 = sphi 0, %s89
    %s91 = sphi 0, %s89
    %s92 = sphi 0, %s91
    %s106 = sphi 0, %s92
    %s112 = sphi 0, %s114
    %s115 = sphi 0, %s112
    %s116 = sphi 0, %s115
    %s132 = sphi 0, %s116
    %s138 = sphi 0, %s140
    %s141 = sphi 0, %s138
    %s142 = sphi 0, %s141
    %s158 = sphi 0, %s142
    %s164 = sphi 0, %s166
    %s167 = sphi 0, %s164
    %s168 = sphi 0, %s167
    %s184 = sphi 0, %s168
  $region4: #{decoder_bottleneck_forward.5} parent=0 // loop_header_branch
    %16 = sbr.rel (%p14) target = $region8
  $region5: #{decoder_bottleneck_forward.5} parent=0 // loop_body
    %s18 = ssub.s32 %s13, 1
    %s19 = ssub.s32 %s13, 2
    %s20 = sadd.s32 %s13, 1
    %s21 = ssub.s32 %s13, %s20
    %p22 = scmp.eq.s32.totalorder %s21, 0
    %s24 = sadd.s32 %s23, 1
    %s25 = scalar_select %p22, %s23, %s24
    %p28 = pneg %p22
    %p29 = scmp.eq.s32.totalorder %s13, 1
    %p30 = por %p28, %p29
    %p31 = scmp.ne.s32.totalorder %s23, %s26
    %p32 = scmp.eq.s32.totalorder %s13, 0
    %p33 = por %p31, %p32
    %p34 = scmp.ne.s32.totalorder %s23, %s26
    %p35 = scmp.eq.s32.totalorder %s18, 1
    %p36 = por %p34, %p35
    %p37 = scmp.ne.s32.totalorder %s26, %s27
    %p38 = scmp.eq.s32.totalorder %s18, 0
    %p39 = por %p37, %p38
    %p40 = scmp.ne.s32.totalorder %s26, %s27
    %p41 = scmp.eq.s32.totalorder %s19, 1
    %p42 = por %p40, %p41
    %p44 = scmp.ne.s32.totalorder %s27, %s43
    %p45 = scmp.eq.s32.totalorder %s19, 0
    %p46 = por %p44, %p45
    %s48 = sadd.s32 %s47, 1
    %p51 = scmp.eq.s32.totalorder %s13, 1
    %p52 = scmp.ne.s32.totalorder %s47, %s49
    %p53 = scmp.eq.s32.totalorder %s13, 0
    %p54 = por %p52, %p53
    %p55 = scmp.ne.s32.totalorder %s47, %s49
    %p56 = scmp.eq.s32.totalorder %s18, 1
    %p57 = por %p55, %p56
    %p58 = scmp.ne.s32.totalorder %s49, %s50
    %p59 = scmp.eq.s32.totalorder %s18, 0
    %p60 = por %p58, %p59
    %p61 = scmp.ne.s32.totalorder %s49, %s50
    %p62 = scmp.eq.s32.totalorder %s19, 1
    %p63 = por %p61, %p62
    %p65 = scmp.ne.s32.totalorder %s50, %s64
    %p66 = scmp.eq.s32.totalorder %s19, 0
    %p67 = por %p65, %p66
    %s69 = sadd.s32 %s68, 1
    %p72 = scmp.eq.s32.totalorder %s13, 1
    %p73 = scmp.ne.s32.totalorder %s68, %s70
    %p74 = scmp.eq.s32.totalorder %s13, 0
    %p75 = por %p73, %p74
    %p76 = scmp.ne.s32.totalorder %s68, %s70
    %p77 = scmp.eq.s32.totalorder %s18, 1
    %p78 = por %p76, %p77
    %p79 = scmp.ne.s32.totalorder %s70, %s71
    %p80 = scmp.eq.s32.totalorder %s18, 0
    %p81 = por %p79, %p80
    %p82 = scmp.ne.s32.totalorder %s70, %s71
    %p83 = scmp.eq.s32.totalorder %s19, 1
    %p84 = por %p82, %p83
    %p86 = scmp.ne.s32.totalorder %s71, %s85
    %p87 = scmp.eq.s32.totalorder %s19, 0
    %p88 = por %p86, %p87
    %s90 = sadd.s32 %s89, 1
    %p93 = scmp.eq.s32.totalorder %s13, 1
    %p94 = scmp.ne.s32.totalorder %s89, %s91
    %p95 = scmp.eq.s32.totalorder %s13, 0
    %p96 = por %p94, %p95
    %p97 = scmp.ne.s32.totalorder %s89, %s91
    %p98 = scmp.eq.s32.totalorder %s18, 1
    %p99 = por %p97, %p98
    %p100 = scmp.ne.s32.totalorder %s91, %s92
    %p101 = scmp.eq.s32.totalorder %s18, 0
    %p102 = por %p100, %p101
    %p103 = scmp.ne.s32.totalorder %s91, %s92
    %p104 = scmp.eq.s32.totalorder %s19, 1
    %p105 = por %p103, %p104
    %p107 = scmp.ne.s32.totalorder %s92, %s106
    %p108 = scmp.eq.s32.totalorder %s19, 0
    %p109 = por %p107, %p108
    %s110 = ssub.s32 %s13, %s20
    %p111 = scmp.eq.s32.totalorder %s110, 0
    %s113 = sadd.s32 %s112, 1
    %s114 = scalar_select %p111, %s112, %s113
    %p117 = pneg %p111
    %p118 = scmp.eq.s32.totalorder %s13, 1
    %p119 = por %p117, %p118
    %p120 = scmp.ne.s32.totalorder %s112, %s115
    %p121 = scmp.eq.s32.totalorder %s13, 0
    %p122 = por %p120, %p121
    %p123 = scmp.ne.s32.totalorder %s112, %s115
    %p124 = scmp.eq.s32.totalorder %s18, 1
    %p125 = por %p123, %p124
    %p126 = scmp.ne.s32.totalorder %s115, %s116
    %p127 = scmp.eq.s32.totalorder %s18, 0
    %p128 = por %p126, %p127
    %p129 = scmp.ne.s32.totalorder %s115, %s116
    %p130 = scmp.eq.s32.totalorder %s19, 1
    %p131 = por %p129, %p130
    %p133 = scmp.ne.s32.totalorder %s116, %s132
    %p134 = scmp.eq.s32.totalorder %s19, 0
    %p135 = por %p133, %p134
    %s136 = ssub.s32 %s13, %s20
    %p137 = scmp.eq.s32.totalorder %s136, 0
    %s139 = sadd.s32 %s138, 1
    %s140 = scalar_select %p137, %s138, %s139
    %p143 = pneg %p137
    %p144 = scmp.eq.s32.totalorder %s13, 1
    %p145 = por %p143, %p144
    %p146 = scmp.ne.s32.totalorder %s138, %s141
    %p147 = scmp.eq.s32.totalorder %s13, 0
    %p148 = por %p146, %p147
    %p149 = scmp.ne.s32.totalorder %s138, %s141
    %p150 = scmp.eq.s32.totalorder %s18, 1
    %p151 = por %p149, %p150
    %p152 = scmp.ne.s32.totalorder %s141, %s142
    %p153 = scmp.eq.s32.totalorder %s18, 0
    %p154 = por %p152, %p153
    %p155 = scmp.ne.s32.totalorder %s141, %s142
    %p156 = scmp.eq.s32.totalorder %s19, 1
    %p157 = por %p155, %p156
    %p159 = scmp.ne.s32.totalorder %s142, %s158
    %p160 = scmp.eq.s32.totalorder %s19, 0
    %p161 = por %p159, %p160
    %s162 = ssub.s32 %s13, %s20
    %p163 = scmp.eq.s32.totalorder %s162, 0
    %s165 = sadd.s32 %s164, 1
    %s166 = scalar_select %p163, %s164, %s165
    %p169 = pneg %p163
    %p170 = scmp.eq.s32.totalorder %s13, 1
    %p171 = por %p169, %p170
    %p172 = scmp.ne.s32.totalorder %s164, %s167
    %p173 = scmp.eq.s32.totalorder %s13, 0
    %p174 = por %p172, %p173
    %p175 = scmp.ne.s32.totalorder %s164, %s167
    %p176 = scmp.eq.s32.totalorder %s18, 1
    %p177 = por %p175, %p176
    %p178 = scmp.ne.s32.totalorder %s167, %s168
    %p179 = scmp.eq.s32.totalorder %s18, 0
    %p180 = por %p178, %p179
    %p181 = scmp.ne.s32.totalorder %s167, %s168
    %p182 = scmp.eq.s32.totalorder %s19, 1
    %p183 = por %p181, %p182
    %p185 = scmp.ne.s32.totalorder %s168, %s184
    %p186 = scmp.eq.s32.totalorder %s19, 0
    %p187 = por %p185, %p186
    %p188 = scmp.le.s32.totalorder 1, %s13
    %p189 = scmp.lt.s32.totalorder %s13, 3
    %p190 = pnand %p188, %p189
    %p191 = pneg %p190
    // Predicated region
    $region9: #{decoder_bottleneck_forward.5} parent=5 // pred_check
      _
    $region10: #{decoder_bottleneck_forward.5} parent=5 // pred_check_branch
      %193 = sbr.rel (%p190) target = $region12
    $region11: #{decoder_bottleneck_forward.5} parent=5 // pred_region
      %s194 = ssub.s32 %s13, 1
      // Predicated region
      $region13: #{decoder_bottleneck_forward.5} parent=11 // pred_check
        %p195 = pneg %p60
      $region14: #{decoder_bottleneck_forward.5} parent=11 // pred_check_branch
        %197 = sbr.rel (%p195) target = $region16
      $region15: #{decoder_bottleneck_forward.5} parent=11 // pred_region
        _
      $region16: #{decoder_bottleneck_forward.5} parent=11 // pred_fallthru
        _
      // Predicated region
      $region17: #{decoder_bottleneck_forward.5} parent=11 // pred_check
        %p198 = pneg %p81
      $region18: #{decoder_bottleneck_forward.5} parent=11 // pred_check_branch
        %200 = sbr.rel (%p198) target = $region20
      $region19: #{decoder_bottleneck_forward.5} parent=11 // pred_region
        _
      $region20: #{decoder_bottleneck_forward.5} parent=11 // pred_fallthru
        _
      // Predicated region
      $region21: #{decoder_bottleneck_forward.5} parent=11 // pred_check
        %p201 = pneg %p102
      $region22: #{decoder_bottleneck_forward.5} parent=11 // pred_check_branch
        %203 = sbr.rel (%p201) target = $region24
      $region23: #{decoder_bottleneck_forward.5} parent=11 // pred_region
        _
      $region24: #{decoder_bottleneck_forward.5} parent=11 // pred_fallthru
        _
    $region12: #{decoder_bottleneck_forward.5} parent=5 // pred_fallthru
      _
    %p204 = scmp.lt.s32.totalorder %s13, 2
    // Predicated region
    $region25: #{decoder_bottleneck_forward.5} parent=5 // pred_check
      %p205 = pneg %p204
    $region26: #{decoder_bottleneck_forward.5} parent=5 // pred_check_branch
      %207 = sbr.rel (%p205) target = $region28
    $region27: #{decoder_bottleneck_forward.5} parent=5 // pred_region
      // Predicated region
      $region29: #{decoder_bottleneck_forward.5} parent=27 // pred_check
        %p208 = pneg %p33
      $region30: #{decoder_bottleneck_forward.5} parent=27 // pred_check_branch
        %210 = sbr.rel (%p208) target = $region32
      $region31: #{decoder_bottleneck_forward.5} parent=27 // pred_region
        %p211 = scmp.lt.s32.totalorder %s13, 1
        %s212 = scalar_select %p211, %s13, 1
        %s213 = smul.addr %s212, 2
        %s214 = smul.addr %s213, 8
        %s215 = scalar_lea.vmem %s0, %s214
      $region32: #{decoder_bottleneck_forward.5} parent=27 // pred_fallthru
        _
    $region28: #{decoder_bottleneck_forward.5} parent=5 // pred_fallthru
      _
    %p216 = scmp.le.s32.totalorder 1, %s13
    %p217 = scmp.lt.s32.totalorder %s13, 3
    %p218 = pnand %p216, %p217
    %p219 = pneg %p218
    // Predicated region
    $region33: #{decoder_bottleneck_forward.5} parent=5 // pred_check
      _
    $region34: #{decoder_bottleneck_forward.5} parent=5 // pred_check_branch
      %221 = sbr.rel (%p218) target = $region36
    $region35: #{decoder_bottleneck_forward.5} parent=5 // pred_region
      %s222 = ssub.s32 %s13, 1
      %p223 = scmp.lt.s32.totalorder %s18, 1
      %s224 = scalar_select %p223, %s18, 1
      %s225 = smul.addr %s224, 2
      %s226 = smul.addr %s225, 8
      %s227 = scalar_lea.vmem %s0, %s226
      %p228 = pneg %p39
      %p229 = pneg %p36
      %p230 = pneg %p60
      %p231 = pneg %p57
      %p232 = pneg %p81
      %p233 = pneg %p78
      %p234 = pneg %p102
      %p235 = pneg %p99
      %p236 = pneg %p128
      %p237 = pneg %p125
      %p238 = scmp.lt.s32.totalorder %s18, 1
      %s239 = scalar_select %p238, %s18, 1
      %s240 = smul.addr %s239, 2
      %s241 = smul.addr %s240, 8
      %s242 = scalar_lea.vmem %s4, %s241
      %p243 = pneg %p154
      %p244 = pneg %p151
      %p245 = scmp.lt.s32.totalorder %s18, 1
      %s246 = scalar_select %p245, %s18, 1
      %s247 = smul.addr %s246, 8
      %s248 = scalar_lea.vmem %s5, %s247
      %p249 = pneg %p180
      %p250 = pneg %p177
      %p251 = scmp.lt.s32.totalorder %s18, 1
      %s252 = scalar_select %p251, %s18, 1
      %s253 = smul.addr %s252, 8
      %s254 = scalar_lea.vmem %s6, %s253
      %p255 = scmp.lt.s32.totalorder %s18, 1
      %s256 = scalar_select %p255, %s18, 1
      %s257 = smul.addr %s256, 2
      %s258 = smul.addr %s257, 8
      %s259 = scalar_lea.vmem %s0, %s258
      %p260 = scmp.lt.s32.totalorder %s18, 1
      %s261 = scalar_select %p260, %s18, 1
      %s262 = smul.addr %s261, 2
      %s263 = smul.addr %s262, 8
      %s264 = scalar_lea.vmem %s4, %s263
      %p265 = scmp.lt.s32.totalorder %s18, 1
      %s266 = scalar_select %p265, %s18, 1
      %s267 = smul.addr %s266, 8
      %s268 = scalar_lea.vmem %s5, %s267
      %p269 = scmp.lt.s32.totalorder %s18, 1
      %s270 = scalar_select %p269, %s18, 1
      %s271 = smul.addr %s270, 8
      %s272 = scalar_lea.vmem %s6, %s271
      %v273 = vld [vmem:[%s259] sm:$0xff]
      %v274 = vld [vmem:[%s259 + $0x8] sm:$0xff]
      %v275 = vld [vmem:[%s1] sm:$0xff]
      %277 = vset.pattern.permute.xlu0 0
      %278 = vperm.xlu0 %277, %v275
      %v279 = vpop.permute.xlu0 %278
      %v281 = vmul.f32 %v273, %v279
      %v282 = vmul.f32 %v274, %v279
      %v283 = vld [vmem:[%s2] sm:$0xff]
      %285 = vset.pattern.permute.xlu0 0
      %286 = vperm.xlu0 %285, %v283
      %v287 = vpop.permute.xlu0 %286
      %v289 = vadd.f32 %v281, %v287
      %v290 = vadd.f32 %v282, %v287
      %v291 = vmax.f32 %v289, 0.0
      %v292 = vmax.f32 %v290, 0.0
      %v293 = vld [vmem:[%s3] sm:$0xff]
      %vm294 = vcmask 64512
      %v296 = vsel %vm294, %v293, 0
      %298 = vmatprep.subr.mxu0 %v292
      %299 = vmatpush1.msra.mxu0 %v291
      %300 = vmatprep.subr.mxu0 0.0
      %301 = vmatpush1.msra.mxu0 0.0
      %302 = vmatprep.subr.mxu0 0.0
      %303 = vmatpush1.msra.mxu0 0.0
      %304 = vmatprep.subr.mxu0 0.0
      %305 = vmatpush1.msra.mxu0 0.0
      %306 = vmatprep.subr.mxu0 0.0
      %307 = vmatpush1.msra.mxu0 0.0
      %308 = vmatprep.subr.mxu0 0.0
      %309 = vmatpush1.msra.mxu0 0.0
      %310 = vmatprep.subr.mxu0 0.0
      %311 = vmatpush1.msra.mxu0 0.0
      %312 = vmatprep.subr.mxu0 0.0
      %313 = vmatpush1.msra.mxu0 0.0
      %314 = vmatprep.subr.mxu0 0.0
      %315 = vmatpush1.msra.mxu0 0.0
      %316 = vmatprep.subr.mxu0 0.0
      %317 = vmatpush1.msra.mxu0 0.0
      %318 = vmatprep.subr.mxu0 0.0
      %319 = vmatpush1.msra.mxu0 0.0
      %320 = vmatprep.subr.mxu0 0.0
      %321 = vmatpush1.msra.mxu0 0.0
      %322 = vmatprep.subr.mxu0 0.0
      %323 = vmatpush1.msra.mxu0 0.0
      %324 = vmatprep.subr.mxu0 0.0
      %325 = vmatpush1.msra.mxu0 0.0
      %326 = vmatprep.subr.mxu0 0.0
      %327 = vmatpush1.msra.mxu0 0.0
      %328 = vmatprep.subr.mxu0 0.0
      %329 = vmatpush1.msra.mxu0 0.0
      %330 = vmatprep.subr.mxu0 0.0
      %331 = vmatpush1.msra.mxu0 0.0
      %332 = vmatprep.subr.mxu0 0.0
      %333 = vmatpush1.msra.mxu0 0.0
      %334 = vmatprep.subr.mxu0 0.0
      %335 = vmatpush1.msra.mxu0 0.0
      %336 = vmatprep.subr.mxu0 0.0
      %337 = vmatpush1.msra.mxu0 0.0
      %338 = vmatprep.subr.mxu0 0.0
      %339 = vmatpush1.msra.mxu0 0.0
      %340 = vmatprep.subr.mxu0 0.0
      %341 = vmatpush1.msra.mxu0 0.0
      %342 = vmatprep.subr.mxu0 0.0
      %343 = vmatpush1.msra.mxu0 0.0
      %344 = vmatprep.subr.mxu0 0.0
      %345 = vmatpush1.msra.mxu0 0.0
      %346 = vmatprep.subr.mxu0 0.0
      %347 = vmatpush1.msra.mxu0 0.0
      %348 = vmatprep.subr.mxu0 0.0
      %349 = vmatpush1.msra.mxu0 0.0
      %350 = vmatprep.subr.mxu0 0.0
      %351 = vmatpush1.msra.mxu0 0.0
      %352 = vmatprep.subr.mxu0 0.0
      %353 = vmatpush1.msra.mxu0 0.0
      %354 = vmatprep.subr.mxu0 0.0
      %355 = vmatpush1.msra.mxu0 0.0
      %356 = vmatprep.subr.mxu0 0.0
      %357 = vmatpush1.msra.mxu0 0.0
      %358 = vmatprep.subr.mxu0 0.0
      %359 = vmatpush1.msra.mxu0 0.0
      %360 = vmatprep.subr.mxu0 0.0
      %361 = vmatpush1.msra.mxu0 0.0
      %362 = vmatprep.mubr.f32.mxu0 0.0
      %363 = vmatmul.mubr.f32.gmra.mrb[0].mxu0 %v296
      %v364 = vpop.f32.mrb[0].mxu0
      %v365 = vadd.f32 0.0, %v364
      %v366 = vpop.f32.mrb[0].mxu0
      %v367 = vadd.f32 0.0, %v366
      %368 = vdwg.mxu0
      %369 = vst [vmem:[%s264] sm:$0xff] %v365
      %370 = vst [vmem:[%s264 + $0x8] sm:$0xff] %v367
      %v371 = vadd.f32 %v365, %v367
      %372 = vadd.xlane.f32.xlu0 %v371
      %v373 = vpop.xlane.xlu0 %372
      %vm374 = vcmask 7168
      %375 = vst.msk [vmem:[%s268] sm:$0xff] %vm374, %v373
      %v376 = vmul.f32 %v365, %v365
      %v377 = vmul.f32 %v367, %v367
      %v378 = vadd.f32 %v376, %v377
      %379 = vadd.xlane.f32.xlu0 %v378
      %v380 = vpop.xlane.xlu0 %379
      %381 = vst.msk [vmem:[%s272] sm:$0xff] %vm374, %v380
      %p382 = scmp.lt.s32.totalorder %s18, 1
      %s383 = scalar_select %p382, %s18, 1
      %s384 = smul.addr %s383, 2
      %s385 = smul.addr %s384, 8
      %s386 = scalar_lea.vmem %s4, %s385
      %p387 = scmp.lt.s32.totalorder %s18, 1
      %s388 = scalar_select %p387, %s18, 1
      %s389 = smul.addr %s388, 8
      %s390 = scalar_lea.vmem %s5, %s389
      %p391 = scmp.lt.s32.totalorder %s18, 1
      %s392 = scalar_select %p391, %s18, 1
      %s393 = smul.addr %s392, 8
      %s394 = scalar_lea.vmem %s6, %s393
      // Predicated region
      $region37: #{decoder_bottleneck_forward.5} parent=35 // pred_check
        %p395 = pneg %p125
      $region38: #{decoder_bottleneck_forward.5} parent=35 // pred_check_branch
        %397 = sbr.rel (%p395) target = $region40
      $region39: #{decoder_bottleneck_forward.5} parent=35 // pred_region
        _
      $region40: #{decoder_bottleneck_forward.5} parent=35 // pred_fallthru
        _
      // Predicated region
      $region41: #{decoder_bottleneck_forward.5} parent=35 // pred_check
        %p398 = pneg %p151
      $region42: #{decoder_bottleneck_forward.5} parent=35 // pred_check_branch
        %400 = sbr.rel (%p398) target = $region44
      $region43: #{decoder_bottleneck_forward.5} parent=35 // pred_region
        _
      $region44: #{decoder_bottleneck_forward.5} parent=35 // pred_fallthru
        _
      // Predicated region
      $region45: #{decoder_bottleneck_forward.5} parent=35 // pred_check
        %p401 = pneg %p177
      $region46: #{decoder_bottleneck_forward.5} parent=35 // pred_check_branch
        %403 = sbr.rel (%p401) target = $region48
      $region47: #{decoder_bottleneck_forward.5} parent=35 // pred_region
        _
      $region48: #{decoder_bottleneck_forward.5} parent=35 // pred_fallthru
        _
    $region36: #{decoder_bottleneck_forward.5} parent=5 // pred_fallthru
      _
    %p404 = scmp.le.s32.totalorder 2, %s13
    // Predicated region
    $region49: #{decoder_bottleneck_forward.5} parent=5 // pred_check
      %p405 = pneg %p404
    $region50: #{decoder_bottleneck_forward.5} parent=5 // pred_check_branch
      %407 = sbr.rel (%p405) target = $region52
    $region51: #{decoder_bottleneck_forward.5} parent=5 // pred_region
      %s408 = ssub.s32 %s13, 2
      // Predicated region
      $region53: #{decoder_bottleneck_forward.5} parent=51 // pred_check
        %p409 = pneg %p131
      $region54: #{decoder_bottleneck_forward.5} parent=51 // pred_check_branch
        %411 = sbr.rel (%p409) target = $region56
      $region55: #{decoder_bottleneck_forward.5} parent=51 // pred_region
        %p412 = scmp.lt.s32.totalorder %s19, 1
        %s413 = scalar_select %p412, %s19, 1
        %s414 = smul.addr %s413, 2
        %s415 = smul.addr %s414, 8
        %s416 = scalar_lea.vmem %s4, %s415
      $region56: #{decoder_bottleneck_forward.5} parent=51 // pred_fallthru
        _
      // Predicated region
      $region57: #{decoder_bottleneck_forward.5} parent=51 // pred_check
        %p417 = pneg %p157
      $region58: #{decoder_bottleneck_forward.5} parent=51 // pred_check_branch
        %419 = sbr.rel (%p417) target = $region60
      $region59: #{decoder_bottleneck_forward.5} parent=51 // pred_region
        %p420 = scmp.lt.s32.totalorder %s19, 1
        %s421 = scalar_select %p420, %s19, 1
        %s422 = smul.addr %s421, 8
        %s423 = scalar_lea.vmem %s5, %s422
      $region60: #{decoder_bottleneck_forward.5} parent=51 // pred_fallthru
        _
      // Predicated region
      $region61: #{decoder_bottleneck_forward.5} parent=51 // pred_check
        %p424 = pneg %p183
      $region62: #{decoder_bottleneck_forward.5} parent=51 // pred_check_branch
        %426 = sbr.rel (%p424) target = $region64
      $region63: #{decoder_bottleneck_forward.5} parent=51 // pred_region
        %p427 = scmp.lt.s32.totalorder %s19, 1
        %s428 = scalar_select %p427, %s19, 1
        %s429 = smul.addr %s428, 8
        %s430 = scalar_lea.vmem %s6, %s429
      $region64: #{decoder_bottleneck_forward.5} parent=51 // pred_fallthru
        _
    $region52: #{decoder_bottleneck_forward.5} parent=5 // pred_fallthru
      _
  $region6: #{decoder_bottleneck_forward.5} parent=0 // loop_footer
    %s17 = sadd.s32 1, %s13
  $region7: #{decoder_bottleneck_forward.5} parent=0 // loop_footer_branch
    %12 = sbr.rel target = $region3
  $region8: #{decoder_bottleneck_forward.5} parent=0 // loop_exit
    _

// kernel: decoder_bottleneck_forward.7
$region0: #{decoder_bottleneck_forward.7}
  #allocation0 [shape = 'u32[]', space=smem, size = 0x4, offset = 0x4, fixed_abs, tag = 'smem constant byte address 0x4 - core index']
  #allocation1 [shape = 'u32[144,128]{1,0:T(1,128)}', space=vmem, size = 0x12000, scoped, tag = 'internal scratch']
  %s0 = inlined_call_operand.vmem [shape: f32[2,8,256], index: 0, kind: input, shape index: {}]
  %s1 = inlined_call_operand.vmem [shape: f32[8,1], index: 1, kind: input, shape index: {}]
  %s2 = inlined_call_operand.vmem [shape: f32[8,1], index: 2, kind: input, shape index: {}]
  %s3 = inlined_call_operand.vmem [shape: f32[16,8], index: 3, kind: input, shape index: {}]
  %s4 = inlined_call_operand.vmem [shape: f32[2,8,256], index: 4, kind: input, shape index: {}]
  %s5 = inlined_call_operand.vmem [shape: f32[8,1], index: 5, kind: input, shape index: {}]
  %s6 = inlined_call_operand.vmem [shape: f32[8,1], index: 6, kind: input, shape index: {}]
  %s7 = inlined_call_operand.vmem [shape: f32[16,8], index: 7, kind: input, shape index: {}]
  %s8 = inlined_call_operand.vmem [shape: f32[2,16,256], index: 8, kind: output, shape index: {}]
  %s9 = sld [smem:[#allocation0]]
  $region65: #{decoder_bottleneck_forward.7} parent=0
    _
  %s11 = ssub.s32 1, %s9
  %s12 = scalar_select 0, %s11, %s9
  loop: start=0, step=1, limit=4
  $region2: #{decoder_bottleneck_forward.7} parent=0 // loop_pre_header
    _
  $region3: #{decoder_bottleneck_forward.7} parent=0 // loop_header
    %s14 = sphi 0, %s18
    %p15 = scmp.ge.s32.totalorder %s14, 4
    %s24 = sphi 0, %s26
    %s27 = sphi 0, %s24
    %s28 = sphi 0, %s27
    %s44 = sphi 0, %s28
    %s48 = sphi 0, %s48
    %s50 = sphi 0, %s48
    %s51 = sphi 0, %s50
    %s65 = sphi 0, %s51
    %s69 = sphi 0, %s69
    %s71 = sphi 0, %s69
    %s72 = sphi 0, %s71
    %s86 = sphi 0, %s72
    %s90 = sphi 0, %s90
    %s92 = sphi 0, %s90
    %s93 = sphi 0, %s92
    %s107 = sphi 0, %s93
    %s113 = sphi 0, %s115
    %s116 = sphi 0, %s113
    %s117 = sphi 0, %s116
    %s133 = sphi 0, %s117
    %s137 = sphi 0, %s137
    %s139 = sphi 0, %s137
    %s140 = sphi 0, %s139
    %s154 = sphi 0, %s140
    %s158 = sphi 0, %s158
    %s160 = sphi 0, %s158
    %s161 = sphi 0, %s160
    %s175 = sphi 0, %s161
    %s179 = sphi 0, %s179
    %s181 = sphi 0, %s179
    %s182 = sphi 0, %s181
    %s196 = sphi 0, %s182
    %s202 = sphi 0, %s204
    %s205 = sphi 0, %s202
    %s206 = sphi 0, %s205
    %s222 = sphi 0, %s206
  $region4: #{decoder_bottleneck_forward.7} parent=0 // loop_header_branch
    %17 = sbr.rel (%p15) target = $region8
  $region5: #{decoder_bottleneck_forward.7} parent=0 // loop_body
    %s19 = ssub.s32 %s14, 1
    %s20 = ssub.s32 %s14, 2
    %s21 = sadd.s32 %s14, 1
    %s22 = ssub.s32 %s14, %s21
    %p23 = scmp.eq.s32.totalorder %s22, 0
    %s25 = sadd.s32 %s24, 1
    %s26 = scalar_select %p23, %s24, %s25
    %p29 = pneg %p23
    %p30 = scmp.eq.s32.totalorder %s14, 1
    %p31 = por %p29, %p30
    %p32 = scmp.ne.s32.totalorder %s24, %s27
    %p33 = scmp.eq.s32.totalorder %s14, 0
    %p34 = por %p32, %p33
    %p35 = scmp.ne.s32.totalorder %s24, %s27
    %p36 = scmp.eq.s32.totalorder %s19, 1
    %p37 = por %p35, %p36
    %p38 = scmp.ne.s32.totalorder %s27, %s28
    %p39 = scmp.eq.s32.totalorder %s19, 0
    %p40 = por %p38, %p39
    %p41 = scmp.ne.s32.totalorder %s27, %s28
    %p42 = scmp.eq.s32.totalorder %s20, 1
    %p43 = por %p41, %p42
    %p45 = scmp.ne.s32.totalorder %s28, %s44
    %p46 = scmp.eq.s32.totalorder %s20, 0
    %p47 = por %p45, %p46
    %s49 = sadd.s32 %s48, 1
    %p52 = scmp.eq.s32.totalorder %s14, 1
    %p53 = scmp.ne.s32.totalorder %s48, %s50
    %p54 = scmp.eq.s32.totalorder %s14, 0
    %p55 = por %p53, %p54
    %p56 = scmp.ne.s32.totalorder %s48, %s50
    %p57 = scmp.eq.s32.totalorder %s19, 1
    %p58 = por %p56, %p57
    %p59 = scmp.ne.s32.totalorder %s50, %s51
    %p60 = scmp.eq.s32.totalorder %s19, 0
    %p61 = por %p59, %p60
    %p62 = scmp.ne.s32.totalorder %s50, %s51
    %p63 = scmp.eq.s32.totalorder %s20, 1
    %p64 = por %p62, %p63
    %p66 = scmp.ne.s32.totalorder %s51, %s65
    %p67 = scmp.eq.s32.totalorder %s20, 0
    %p68 = por %p66, %p67
    %s70 = sadd.s32 %s69, 1
    %p73 = scmp.eq.s32.totalorder %s14, 1
    %p74 = scmp.ne.s32.totalorder %s69, %s71
    %p75 = scmp.eq.s32.totalorder %s14, 0
    %p76 = por %p74, %p75
    %p77 = scmp.ne.s32.totalorder %s69, %s71
    %p78 = scmp.eq.s32.totalorder %s19, 1
    %p79 = por %p77, %p78
    %p80 = scmp.ne.s32.totalorder %s71, %s72
    %p81 = scmp.eq.s32.totalorder %s19, 0
    %p82 = por %p80, %p81
    %p83 = scmp.ne.s32.totalorder %s71, %s72
    %p84 = scmp.eq.s32.totalorder %s20, 1
    %p85 = por %p83, %p84
    %p87 = scmp.ne.s32.totalorder %s72, %s86
    %p88 = scmp.eq.s32.totalorder %s20, 0
    %p89 = por %p87, %p88
    %s91 = sadd.s32 %s90, 1
    %p94 = scmp.eq.s32.totalorder %s14, 1
    %p95 = scmp.ne.s32.totalorder %s90, %s92
    %p96 = scmp.eq.s32.totalorder %s14, 0
    %p97 = por %p95, %p96
    %p98 = scmp.ne.s32.totalorder %s90, %s92
    %p99 = scmp.eq.s32.totalorder %s19, 1
    %p100 = por %p98, %p99
    %p101 = scmp.ne.s32.totalorder %s92, %s93
    %p102 = scmp.eq.s32.totalorder %s19, 0
    %p103 = por %p101, %p102
    %p104 = scmp.ne.s32.totalorder %s92, %s93
    %p105 = scmp.eq.s32.totalorder %s20, 1
    %p106 = por %p104, %p105
    %p108 = scmp.ne.s32.totalorder %s93, %s107
    %p109 = scmp.eq.s32.totalorder %s20, 0
    %p110 = por %p108, %p109
    %s111 = ssub.s32 %s14, %s21
    %p112 = scmp.eq.s32.totalorder %s111, 0
    %s114 = sadd.s32 %s113, 1
    %s115 = scalar_select %p112, %s113, %s114
    %p118 = pneg %p112
    %p119 = scmp.eq.s32.totalorder %s14, 1
    %p120 = por %p118, %p119
    %p121 = scmp.ne.s32.totalorder %s113, %s116
    %p122 = scmp.eq.s32.totalorder %s14, 0
    %p123 = por %p121, %p122
    %p124 = scmp.ne.s32.totalorder %s113, %s116
    %p125 = scmp.eq.s32.totalorder %s19, 1
    %p126 = por %p124, %p125
    %p127 = scmp.ne.s32.totalorder %s116, %s117
    %p128 = scmp.eq.s32.totalorder %s19, 0
    %p129 = por %p127, %p128
    %p130 = scmp.ne.s32.totalorder %s116, %s117
    %p131 = scmp.eq.s32.totalorder %s20, 1
    %p132 = por %p130, %p131
    %p134 = scmp.ne.s32.totalorder %s117, %s133
    %p135 = scmp.eq.s32.totalorder %s20, 0
    %p136 = por %p134, %p135
    %s138 = sadd.s32 %s137, 1
    %p141 = scmp.eq.s32.totalorder %s14, 1
    %p142 = scmp.ne.s32.totalorder %s137, %s139
    %p143 = scmp.eq.s32.totalorder %s14, 0
    %p144 = por %p142, %p143
    %p145 = scmp.ne.s32.totalorder %s137, %s139
    %p146 = scmp.eq.s32.totalorder %s19, 1
    %p147 = por %p145, %p146
    %p148 = scmp.ne.s32.totalorder %s139, %s140
    %p149 = scmp.eq.s32.totalorder %s19, 0
    %p150 = por %p148, %p149
    %p151 = scmp.ne.s32.totalorder %s139, %s140
    %p152 = scmp.eq.s32.totalorder %s20, 1
    %p153 = por %p151, %p152
    %p155 = scmp.ne.s32.totalorder %s140, %s154
    %p156 = scmp.eq.s32.totalorder %s20, 0
    %p157 = por %p155, %p156
    %s159 = sadd.s32 %s158, 1
    %p162 = scmp.eq.s32.totalorder %s14, 1
    %p163 = scmp.ne.s32.totalorder %s158, %s160
    %p164 = scmp.eq.s32.totalorder %s14, 0
    %p165 = por %p163, %p164
    %p166 = scmp.ne.s32.totalorder %s158, %s160
    %p167 = scmp.eq.s32.totalorder %s19, 1
    %p168 = por %p166, %p167
    %p169 = scmp.ne.s32.totalorder %s160, %s161
    %p170 = scmp.eq.s32.totalorder %s19, 0
    %p171 = por %p169, %p170
    %p172 = scmp.ne.s32.totalorder %s160, %s161
    %p173 = scmp.eq.s32.totalorder %s20, 1
    %p174 = por %p172, %p173
    %p176 = scmp.ne.s32.totalorder %s161, %s175
    %p177 = scmp.eq.s32.totalorder %s20, 0
    %p178 = por %p176, %p177
    %s180 = sadd.s32 %s179, 1
    %p183 = scmp.eq.s32.totalorder %s14, 1
    %p184 = scmp.ne.s32.totalorder %s179, %s181
    %p185 = scmp.eq.s32.totalorder %s14, 0
    %p186 = por %p184, %p185
    %p187 = scmp.ne.s32.totalorder %s179, %s181
    %p188 = scmp.eq.s32.totalorder %s19, 1
    %p189 = por %p187, %p188
    %p190 = scmp.ne.s32.totalorder %s181, %s182
    %p191 = scmp.eq.s32.totalorder %s19, 0
    %p192 = por %p190, %p191
    %p193 = scmp.ne.s32.totalorder %s181, %s182
    %p194 = scmp.eq.s32.totalorder %s20, 1
    %p195 = por %p193, %p194
    %p197 = scmp.ne.s32.totalorder %s182, %s196
    %p198 = scmp.eq.s32.totalorder %s20, 0
    %p199 = por %p197, %p198
    %s200 = ssub.s32 %s14, %s21
    %p201 = scmp.eq.s32.totalorder %s200, 0
    %s203 = sadd.s32 %s202, 1
    %s204 = scalar_select %p201, %s202, %s203
    %p207 = pneg %p201
    %p208 = scmp.eq.s32.totalorder %s14, 1
    %p209 = por %p207, %p208
    %p210 = scmp.ne.s32.totalorder %s202, %s205
    %p211 = scmp.eq.s32.totalorder %s14, 0
    %p212 = por %p210, %p211
    %p213 = scmp.ne.s32.totalorder %s202, %s205
    %p214 = scmp.eq.s32.totalorder %s19, 1
    %p215 = por %p213, %p214
    %p216 = scmp.ne.s32.totalorder %s205, %s206
    %p217 = scmp.eq.s32.totalorder %s19, 0
    %p218 = por %p216, %p217
    %p219 = scmp.ne.s32.totalorder %s205, %s206
    %p220 = scmp.eq.s32.totalorder %s20, 1
    %p221 = por %p219, %p220
    %p223 = scmp.ne.s32.totalorder %s206, %s222
    %p224 = scmp.eq.s32.totalorder %s20, 0
    %p225 = por %p223, %p224
    %p226 = scmp.le.s32.totalorder 1, %s14
    %p227 = scmp.lt.s32.totalorder %s14, 3
    %p228 = pnand %p226, %p227
    %p229 = pneg %p228
    // Predicated region
    $region9: #{decoder_bottleneck_forward.7} parent=5 // pred_check
      _
    $region10: #{decoder_bottleneck_forward.7} parent=5 // pred_check_branch
      %231 = sbr.rel (%p228) target = $region12
    $region11: #{decoder_bottleneck_forward.7} parent=5 // pred_region
      %s232 = ssub.s32 %s14, 1
      // Predicated region
      $region13: #{decoder_bottleneck_forward.7} parent=11 // pred_check
        %p233 = pneg %p61
      $region14: #{decoder_bottleneck_forward.7} parent=11 // pred_check_branch
        %235 = sbr.rel (%p233) target = $region16
      $region15: #{decoder_bottleneck_forward.7} parent=11 // pred_region
        _
      $region16: #{decoder_bottleneck_forward.7} parent=11 // pred_fallthru
        _
      // Predicated region
      $region17: #{decoder_bottleneck_forward.7} parent=11 // pred_check
        %p236 = pneg %p82
      $region18: #{decoder_bottleneck_forward.7} parent=11 // pred_check_branch
        %238 = sbr.rel (%p236) target = $region20
      $region19: #{decoder_bottleneck_forward.7} parent=11 // pred_region
        _
      $region20: #{decoder_bottleneck_forward.7} parent=11 // pred_fallthru
        _
      // Predicated region
      $region21: #{decoder_bottleneck_forward.7} parent=11 // pred_check
        %p239 = pneg %p103
      $region22: #{decoder_bottleneck_forward.7} parent=11 // pred_check_branch
        %241 = sbr.rel (%p239) target = $region24
      $region23: #{decoder_bottleneck_forward.7} parent=11 // pred_region
        _
      $region24: #{decoder_bottleneck_forward.7} parent=11 // pred_fallthru
        _
      // Predicated region
      $region25: #{decoder_bottleneck_forward.7} parent=11 // pred_check
        %p242 = pneg %p150
      $region26: #{decoder_bottleneck_forward.7} parent=11 // pred_check_branch
        %244 = sbr.rel (%p242) target = $region28
      $region27: #{decoder_bottleneck_forward.7} parent=11 // pred_region
        _
      $region28: #{decoder_bottleneck_forward.7} parent=11 // pred_fallthru
        _
      // Predicated region
      $region29: #{decoder_bottleneck_forward.7} parent=11 // pred_check
        %p245 = pneg %p171
      $region30: #{decoder_bottleneck_forward.7} parent=11 // pred_check_branch
        %247 = sbr.rel (%p245) target = $region32
      $region31: #{decoder_bottleneck_forward.7} parent=11 // pred_region
        _
      $region32: #{decoder_bottleneck_forward.7} parent=11 // pred_fallthru
        _
      // Predicated region
      $region33: #{decoder_bottleneck_forward.7} parent=11 // pred_check
        %p248 = pneg %p192
      $region34: #{decoder_bottleneck_forward.7} parent=11 // pred_check_branch
        %250 = sbr.rel (%p248) target = $region36
      $region35: #{decoder_bottleneck_forward.7} parent=11 // pred_region
        _
      $region36: #{decoder_bottleneck_forward.7} parent=11 // pred_fallthru
        _
    $region12: #{decoder_bottleneck_forward.7} parent=5 // pred_fallthru
      _
    %p251 = scmp.lt.s32.totalorder %s14, 2
    // Predicated region
    $region37: #{decoder_bottleneck_forward.7} parent=5 // pred_check
      %p252 = pneg %p251
    $region38: #{decoder_bottleneck_forward.7} parent=5 // pred_check_branch
      %254 = sbr.rel (%p252) target = $region40
    $region39: #{decoder_bottleneck_forward.7} parent=5 // pred_region
      // Predicated region
      $region41: #{decoder_bottleneck_forward.7} parent=39 // pred_check
        %p255 = pneg %p34
      $region42: #{decoder_bottleneck_forward.7} parent=39 // pred_check_branch
        %257 = sbr.rel (%p255) target = $region44
      $region43: #{decoder_bottleneck_forward.7} parent=39 // pred_region
        %p258 = scmp.lt.s32.totalorder %s14, 1
        %s259 = scalar_select %p258, %s14, 1
        %s260 = smul.addr %s259, 2
        %s261 = smul.addr %s260, 8
        %s262 = scalar_lea.vmem %s0, %s261
      $region44: #{decoder_bottleneck_forward.7} parent=39 // pred_fallthru
        _
      // Predicated region
      $region45: #{decoder_bottleneck_forward.7} parent=39 // pred_check
        %p263 = pneg %p123
      $region46: #{decoder_bottleneck_forward.7} parent=39 // pred_check_branch
        %265 = sbr.rel (%p263) target = $region48
      $region47: #{decoder_bottleneck_forward.7} parent=39 // pred_region
        %p266 = scmp.lt.s32.totalorder %s14, 1
        %s267 = scalar_select %p266, %s14, 1
        %s268 = smul.addr %s267, 2
        %s269 = smul.addr %s268, 8
        %s270 = scalar_lea.vmem %s4, %s269
      $region48: #{decoder_bottleneck_forward.7} parent=39 // pred_fallthru
        _
    $region40: #{decoder_bottleneck_forward.7} parent=5 // pred_fallthru
      _
    %p271 = scmp.le.s32.totalorder 1, %s14
    %p272 = scmp.lt.s32.totalorder %s14, 3
    %p273 = pnand %p271, %p272
    %p274 = pneg %p273
    // Predicated region
    $region49: #{decoder_bottleneck_forward.7} parent=5 // pred_check
      _
    $region50: #{decoder_bottleneck_forward.7} parent=5 // pred_check_branch
      %276 = sbr.rel (%p273) target = $region52
    $region51: #{decoder_bottleneck_forward.7} parent=5 // pred_region
      %s277 = ssub.s32 %s14, 1
      %p278 = scmp.lt.s32.totalorder %s19, 1
      %s279 = scalar_select %p278, %s19, 1
      %s280 = smul.addr %s279, 2
      %s281 = smul.addr %s280, 8
      %s282 = scalar_lea.vmem %s0, %s281
      %p283 = pneg %p40
      %p284 = pneg %p37
      %p285 = pneg %p61
      %p286 = pneg %p58
      %p287 = pneg %p82
      %p288 = pneg %p79
      %p289 = pneg %p103
      %p290 = pneg %p100
      %p291 = scmp.lt.s32.totalorder %s19, 1
      %s292 = scalar_select %p291, %s19, 1
      %s293 = smul.addr %s292, 2
      %s294 = smul.addr %s293, 8
      %s295 = scalar_lea.vmem %s4, %s294
      %p296 = pneg %p129
      %p297 = pneg %p126
      %p298 = pneg %p150
      %p299 = pneg %p147
      %p300 = pneg %p171
      %p301 = pneg %p168
      %p302 = pneg %p192
      %p303 = pneg %p189
      %p304 = pneg %p218
      %p305 = pneg %p215
      %p306 = scmp.lt.s32.totalorder %s19, 1
      %s307 = scalar_select %p306, %s19, 1
      %s308 = smul.addr %s307, 4
      %s309 = smul.addr %s308, 8
      %s310 = scalar_lea.vmem %s8, %s309
      %p311 = scmp.lt.s32.totalorder %s19, 1
      %s312 = scalar_select %p311, %s19, 1
      %s313 = smul.addr %s312, 2
      %s314 = smul.addr %s313, 8
      %s315 = scalar_lea.vmem %s0, %s314
      %p316 = scmp.lt.s32.totalorder %s19, 1
      %s317 = scalar_select %p316, %s19, 1
      %s318 = smul.addr %s317, 2
      %s319 = smul.addr %s318, 8
      %s320 = scalar_lea.vmem %s4, %s319
      %p321 = scmp.lt.s32.totalorder %s19, 1
      %s322 = scalar_select %p321, %s19, 1
      %s323 = smul.addr %s322, 4
      %s324 = smul.addr %s323, 8
      %s325 = scalar_lea.vmem %s8, %s324
      %v326 = vld [vmem:[%s315] sm:$0xff]
      %v327 = vld [vmem:[%s315 + $0x8] sm:$0xff]
      %v328 = vld [vmem:[%s1] sm:$0xff]
      %330 = vset.pattern.permute.xlu0 0
      %331 = vperm.xlu0 %330, %v328
      %v332 = vpop.permute.xlu0 %331
      %v334 = vmul.f32 %v326, %v332
      %v335 = vmul.f32 %v327, %v332
      %v336 = vld [vmem:[%s2] sm:$0xff]
      %338 = vset.pattern.permute.xlu0 0
      %339 = vperm.xlu0 %338, %v336
      %v340 = vpop.permute.xlu0 %339
      %v342 = vadd.f32 %v334, %v340
      %v343 = vadd.f32 %v335, %v340
      %v344 = vmax.f32 %v342, 0.0
      %v345 = vmax.f32 %v343, 0.0
      %v346 = vld [vmem:[%s3] sm:$0xff]
      %v347 = vld [vmem:[%s3 + $0x8] sm:$0xff]
      %v348 = vld [vmem:[%s320] sm:$0xff]
      %v349 = vld [vmem:[%s320 + $0x8] sm:$0xff]
      %v350 = vld [vmem:[%s5] sm:$0xff]
      %352 = vset.pattern.permute.xlu0 0
      %353 = vperm.xlu0 %352, %v350
      %v354 = vpop.permute.xlu0 %353
      %v356 = vmul.f32 %v348, %v354
      %v357 = vmul.f32 %v349, %v354
      %v358 = vld [vmem:[%s6] sm:$0xff]
      %360 = vset.pattern.permute.xlu0 0
      %361 = vperm.xlu0 %360, %v358
      %v362 = vpop.permute.xlu0 %361
      %v364 = vadd.f32 %v356, %v362
      %v365 = vadd.f32 %v357, %v362
      %v366 = vmax.f32 %v364, 0.0
      %v367 = vmax.f32 %v365, 0.0
      %v368 = vld [vmem:[%s7] sm:$0xff]
      %v369 = vld [vmem:[%s7 + $0x8] sm:$0xff]
      %vm370 = vcmask 64512
      %v372 = vsel %vm370, %v368, 0
      %v375 = vsel %vm370, %v369, 0
      %377 = vmatprep.subr.mxu0 %v367
      %378 = vmatpush1.msra.mxu0 %v366
      %379 = vmatprep.subr.mxu0 0.0
      %380 = vmatpush1.msra.mxu0 0.0
      %381 = vmatprep.subr.mxu0 0.0
      %382 = vmatpush1.msra.mxu0 0.0
      %383 = vmatprep.subr.mxu0 0.0
      %384 = vmatpush1.msra.mxu0 0.0
      %385 = vmatprep.subr.mxu0 0.0
      %386 = vmatpush1.msra.mxu0 0.0
      %387 = vmatprep.subr.mxu0 0.0
      %388 = vmatpush1.msra.mxu0 0.0
      %389 = vmatprep.subr.mxu0 0.0
      %390 = vmatpush1.msra.mxu0 0.0
      %391 = vmatprep.subr.mxu0 0.0
      %392 = vmatpush1.msra.mxu0 0.0
      %393 = vmatprep.subr.mxu0 0.0
      %394 = vmatpush1.msra.mxu0 0.0
      %395 = vmatprep.subr.mxu0 0.0
      %396 = vmatpush1.msra.mxu0 0.0
      %397 = vmatprep.subr.mxu0 0.0
      %398 = vmatpush1.msra.mxu0 0.0
      %399 = vmatprep.subr.mxu0 0.0
      %400 = vmatpush1.msra.mxu0 0.0
      %401 = vmatprep.subr.mxu0 0.0
      %402 = vmatpush1.msra.mxu0 0.0
      %403 = vmatprep.subr.mxu0 0.0
      %404 = vmatpush1.msra.mxu0 0.0
      %405 = vmatprep.subr.mxu0 0.0
      %406 = vmatpush1.msra.mxu0 0.0
      %407 = vmatprep.subr.mxu0 0.0
      %408 = vmatpush1.msra.mxu0 0.0
      %409 = vmatprep.subr.mxu0 0.0
      %410 = vmatpush1.msra.mxu0 0.0
      %411 = vmatprep.subr.mxu0 0.0
      %412 = vmatpush1.msra.mxu0 0.0
      %413 = vmatprep.subr.mxu0 0.0
      %414 = vmatpush1.msra.mxu0 0.0
      %415 = vmatprep.subr.mxu0 0.0
      %416 = vmatpush1.msra.mxu0 0.0
      %417 = vmatprep.subr.mxu0 0.0
      %418 = vmatpush1.msra.mxu0 0.0
      %419 = vmatprep.subr.mxu0 0.0
      %420 = vmatpush1.msra.mxu0 0.0
      %421 = vmatprep.subr.mxu0 0.0
      %422 = vmatpush1.msra.mxu0 0.0
      %423 = vmatprep.subr.mxu0 0.0
      %424 = vmatpush1.msra.mxu0 0.0
      %425 = vmatprep.subr.mxu0 0.0
      %426 = vmatpush1.msra.mxu0 0.0
      %427 = vmatprep.subr.mxu0 0.0
      %428 = vmatpush1.msra.mxu0 0.0
      %429 = vmatprep.subr.mxu0 0.0
      %430 = vmatpush1.msra.mxu0 0.0
      %431 = vmatprep.subr.mxu0 0.0
      %432 = vmatpush1.msra.mxu0 0.0
      %433 = vmatprep.subr.mxu0 0.0
      %434 = vmatpush1.msra.mxu0 0.0
      %435 = vmatprep.subr.mxu0 0.0
      %436 = vmatpush1.msra.mxu0 0.0
      %437 = vmatprep.subr.mxu0 0.0
      %438 = vmatpush1.msra.mxu0 0.0
      %439 = vmatprep.subr.mxu0 0.0
      %440 = vmatpush1.msra.mxu0 0.0
      %441 = vmatprep.mubr.f32.mxu0 0.0
      %442 = vmatmul.mubr.f32.gmra.mrb[0].mxu0 %v372
      %v443 = vpop.f32.mrb[0].mxu0
      %v444 = vadd.f32 0.0, %v443
      %v445 = vpop.f32.mrb[0].mxu0
      %v446 = vadd.f32 0.0, %v445
      %447 = vmatprep.mubr.f32.mxu0 0.0
      %448 = vmatmul.mubr.f32.gmra.mrb[0].mxu0 %v375
      %v449 = vpop.f32.mrb[0].mxu0
      %v450 = vadd.f32 0.0, %v449
      %v451 = vpop.f32.mrb[0].mxu0
      %v452 = vadd.f32 0.0, %v451
      %453 = vdwg.mxu0
      %v455 = vsel %vm370, %v346, 0
      %v458 = vsel %vm370, %v347, 0
      %460 = vmatprep.subr.mxu0 %v345
      %461 = vmatpush1.msra.mxu0 %v344
      %462 = vmatprep.subr.mxu0 0.0
      %463 = vmatpush1.msra.mxu0 0.0
      %464 = vmatprep.subr.mxu0 0.0
      %465 = vmatpush1.msra.mxu0 0.0
      %466 = vmatprep.subr.mxu0 0.0
      %467 = vmatpush1.msra.mxu0 0.0
      %468 = vmatprep.subr.mxu0 0.0
      %469 = vmatpush1.msra.mxu0 0.0
      %470 = vmatprep.subr.mxu0 0.0
      %471 = vmatpush1.msra.mxu0 0.0
      %472 = vmatprep.subr.mxu0 0.0
      %473 = vmatpush1.msra.mxu0 0.0
      %474 = vmatprep.subr.mxu0 0.0
      %475 = vmatpush1.msra.mxu0 0.0
      %476 = vmatprep.subr.mxu0 0.0
      %477 = vmatpush1.msra.mxu0 0.0
      %478 = vmatprep.subr.mxu0 0.0
      %479 = vmatpush1.msra.mxu0 0.0
      %480 = vmatprep.subr.mxu0 0.0
      %481 = vmatpush1.msra.mxu0 0.0
      %482 = vmatprep.subr.mxu0 0.0
      %483 = vmatpush1.msra.mxu0 0.0
      %484 = vmatprep.subr.mxu0 0.0
      %485 = vmatpush1.msra.mxu0 0.0
      %486 = vmatprep.subr.mxu0 0.0
      %487 = vmatpush1.msra.mxu0 0.0
      %488 = vmatprep.subr.mxu0 0.0
      %489 = vmatpush1.msra.mxu0 0.0
      %490 = vmatprep.subr.mxu0 0.0
      %491 = vmatpush1.msra.mxu0 0.0
      %492 = vmatprep.subr.mxu0 0.0
      %493 = vmatpush1.msra.mxu0 0.0
      %494 = vmatprep.subr.mxu0 0.0
      %495 = vmatpush1.msra.mxu0 0.0
      %496 = vmatprep.subr.mxu0 0.0
      %497 = vmatpush1.msra.mxu0 0.0
      %498 = vmatprep.subr.mxu0 0.0
      %499 = vmatpush1.msra.mxu0 0.0
      %500 = vmatprep.subr.mxu0 0.0
      %501 = vmatpush1.msra.mxu0 0.0
      %502 = vmatprep.subr.mxu0 0.0
      %503 = vmatpush1.msra.mxu0 0.0
      %504 = vmatprep.subr.mxu0 0.0
      %505 = vmatpush1.msra.mxu0 0.0
      %506 = vmatprep.subr.mxu0 0.0
      %507 = vmatpush1.msra.mxu0 0.0
      %508 = vmatprep.subr.mxu0 0.0
      %509 = vmatpush1.msra.mxu0 0.0
      %510 = vmatprep.subr.mxu0 0.0
      %511 = vmatpush1.msra.mxu0 0.0
      %512 = vmatprep.subr.mxu0 0.0
      %513 = vmatpush1.msra.mxu0 0.0
      %514 = vmatprep.subr.mxu0 0.0
      %515 = vmatpush1.msra.mxu0 0.0
      %516 = vmatprep.subr.mxu0 0.0
      %517 = vmatpush1.msra.mxu0 0.0
      %518 = vmatprep.subr.mxu0 0.0
      %519 = vmatpush1.msra.mxu0 0.0
      %520 = vmatprep.subr.mxu0 0.0
      %521 = vmatpush1.msra.mxu0 0.0
      %522 = vmatprep.subr.mxu0 0.0
      %523 = vmatpush1.msra.mxu0 0.0
      %524 = vmatprep.mubr.f32.mxu0 0.0
      %525 = vmatmul.mubr.f32.gmra.mrb[0].mxu0 %v455
      %v526 = vpop.f32.mrb[0].mxu0
      %v527 = vadd.f32 %v444, %v526
      %v528 = vpop.f32.mrb[0].mxu0
      %v529 = vadd.f32 %v446, %v528
      %530 = vmatprep.mubr.f32.mxu0 0.0
      %531 = vmatmul.mubr.f32.gmra.mrb[0].mxu0 %v458
      %v532 = vpop.f32.mrb[0].mxu0
      %v533 = vadd.f32 %v450, %v532
      %v534 = vpop.f32.mrb[0].mxu0
      %v535 = vadd.f32 %v452, %v534
      %536 = vdwg.mxu0
      %537 = vst [vmem:[%s325] sm:$0xff] %v527
      %538 = vst [vmem:[%s325 + $0x8] sm:$0xff] %v529
      %539 = vst [vmem:[%s325 + $0x10] sm:$0xff] %v533
      %540 = vst [vmem:[%s325 + $0x18] sm:$0xff] %v535
      %p541 = scmp.lt.s32.totalorder %s19, 1
      %s542 = scalar_select %p541, %s19, 1
      %s543 = smul.addr %s542, 4
      %s544 = smul.addr %s543, 8
      %s545 = scalar_lea.vmem %s8, %s544
      // Predicated region
      $region53: #{decoder_bottleneck_forward.7} parent=51 // pred_check
        %p546 = pneg %p215
      $region54: #{decoder_bottleneck_forward.7} parent=51 // pred_check_branch
        %548 = sbr.rel (%p546) target = $region56
      $region55: #{decoder_bottleneck_forward.7} parent=51 // pred_region
        _
      $region56: #{decoder_bottleneck_forward.7} parent=51 // pred_fallthru
        _
    $region52: #{decoder_bottleneck_forward.7} parent=5 // pred_fallthru
      _
    %p549 = scmp.le.s32.totalorder 2, %s14
    // Predicated region
    $region57: #{decoder_bottleneck_forward.7} parent=5 // pred_check
      %p550 = pneg %p549
    $region58: #{decoder_bottleneck_forward.7} parent=5 // pred_check_branch
      %552 = sbr.rel (%p550) target = $region60
    $region59: #{decoder_bottleneck_forward.7} parent=5 // pred_region
      %s553 = ssub.s32 %s14, 2
      // Predicated region
      $region61: #{decoder_bottleneck_forward.7} parent=59 // pred_check
        %p554 = pneg %p221
      $region62: #{decoder_bottleneck_forward.7} parent=59 // pred_check_branch
        %556 = sbr.rel (%p554) target = $region64
      $region63: #{decoder_bottleneck_forward.7} parent=59 // pred_region
        %p557 = scmp.lt.s32.totalorder %s20, 1
        %s558 = scalar_select %p557, %s20, 1
        %s559 = smul.addr %s558, 4
        %s560 = smul.addr %s559, 8
        %s561 = scalar_lea.vmem %s8, %s560
      $region64: #{decoder_bottleneck_forward.7} parent=59 // pred_fallthru
        _
    $region60: #{decoder_bottleneck_forward.7} parent=5 // pred_fallthru
      _
  $region6: #{decoder_bottleneck_forward.7} parent=0 // loop_footer
    %s18 = sadd.s32 1, %s14
  $region7: #{decoder_bottleneck_forward.7} parent=0 // loop_footer_branch
    %13 = sbr.rel target = $region3
  $region8: #{decoder_bottleneck_forward.7} parent=0 // loop_exit
    _

// kernel: decoder_bottleneck_forward.6
$region0: #{decoder_bottleneck_forward.6}
  #allocation0 [shape = 'u32[]', space=smem, size = 0x4, offset = 0x4, fixed_abs, tag = 'smem constant byte address 0x4 - core index']
  #allocation1 [shape = 'u32[144,128]{1,0:T(1,128)}', space=vmem, size = 0x12000, scoped, tag = 'internal scratch']
  %s0 = inlined_call_operand.vmem [shape: f32[2,8,256], index: 0, kind: input, shape index: {}]
  %s1 = inlined_call_operand.vmem [shape: f32[8,1], index: 1, kind: input, shape index: {}]
  %s2 = inlined_call_operand.vmem [shape: f32[8,1], index: 2, kind: input, shape index: {}]
  %s3 = inlined_call_operand.vmem [shape: f32[8,72], index: 3, kind: input, shape index: {}]
  %s4 = inlined_call_operand.vmem [shape: f32[9,1,256], index: 4, kind: input, shape index: {}]
  %s5 = inlined_call_operand.vmem [shape: f32[2,8,256], index: 5, kind: output, shape index: {0}]
  %s6 = inlined_call_operand.vmem [shape: f32[2,8,1], index: 6, kind: output, shape index: {1}]
  %s7 = inlined_call_operand.vmem [shape: f32[2,8,1], index: 7, kind: output, shape index: {2}]
  %8 = xla_tuple %s5, %s6, %s7
  %s9 = sld [smem:[#allocation0]]
  $region69: #{decoder_bottleneck_forward.6} parent=0
    _
  %s11 = ssub.s32 1, %s9
  %s12 = scalar_select 0, %s11, %s9
  loop: start=0, step=1, limit=4
  $region2: #{decoder_bottleneck_forward.6} parent=0 // loop_pre_header
    _
  $region3: #{decoder_bottleneck_forward.6} parent=0 // loop_header
    %s14 = sphi 0, %s18
    %p15 = scmp.ge.s32.totalorder %s14, 4
    %s24 = sphi 0, %s26
    %s27 = sphi 0, %s24
    %s28 = sphi 0, %s27
    %s44 = sphi 0, %s28
    %s48 = sphi 0, %s48
    %s50 = sphi 0, %s48
    %s51 = sphi 0, %s50
    %s65 = sphi 0, %s51
    %s69 = sphi 0, %s69
    %s71 = sphi 0, %s69
    %s72 = sphi 0, %s71
    %s86 = sphi 0, %s72
    %s90 = sphi 0, %s90
    %s92 = sphi 0, %s90
    %s93 = sphi 0, %s92
    %s107 = sphi 0, %s93
    %s111 = sphi 0, %s111
    %s113 = sphi 0, %s111
    %s114 = sphi 0, %s113
    %s128 = sphi 0, %s114
    %s134 = sphi 0, %s136
    %s137 = sphi 0, %s134
    %s138 = sphi 0, %s137
    %s154 = sphi 0, %s138
    %s160 = sphi 0, %s162
    %s163 = sphi 0, %s160
    %s164 = sphi 0, %s163
    %s180 = sphi 0, %s164
    %s186 = sphi 0, %s188
    %s189 = sphi 0, %s186
    %s190 = sphi 0, %s189
    %s206 = sphi 0, %s190
  $region4: #{decoder_bottleneck_forward.6} parent=0 // loop_header_branch
    %17 = sbr.rel (%p15) target = $region8
  $region5: #{decoder_bottleneck_forward.6} parent=0 // loop_body
    %s19 = ssub.s32 %s14, 1
    %s20 = ssub.s32 %s14, 2
    %s21 = sadd.s32 %s14, 1
    %s22 = ssub.s32 %s14, %s21
    %p23 = scmp.eq.s32.totalorder %s22, 0
    %s25 = sadd.s32 %s24, 1
    %s26 = scalar_select %p23, %s24, %s25
    %p29 = pneg %p23
    %p30 = scmp.eq.s32.totalorder %s14, 1
    %p31 = por %p29, %p30
    %p32 = scmp.ne.s32.totalorder %s24, %s27
    %p33 = scmp.eq.s32.totalorder %s14, 0
    %p34 = por %p32, %p33
    %p35 = scmp.ne.s32.totalorder %s24, %s27
    %p36 = scmp.eq.s32.totalorder %s19, 1
    %p37 = por %p35, %p36
    %p38 = scmp.ne.s32.totalorder %s27, %s28
    %p39 = scmp.eq.s32.totalorder %s19, 0
    %p40 = por %p38, %p39
    %p41 = scmp.ne.s32.totalorder %s27, %s28
    %p42 = scmp.eq.s32.totalorder %s20, 1
    %p43 = por %p41, %p42
    %p45 = scmp.ne.s32.totalorder %s28, %s44
    %p46 = scmp.eq.s32.totalorder %s20, 0
    %p47 = por %p45, %p46
    %s49 = sadd.s32 %s48, 1
    %p52 = scmp.eq.s32.totalorder %s14, 1
    %p53 = scmp.ne.s32.totalorder %s48, %s50
    %p54 = scmp.eq.s32.totalorder %s14, 0
    %p55 = por %p53, %p54
    %p56 = scmp.ne.s32.totalorder %s48, %s50
    %p57 = scmp.eq.s32.totalorder %s19, 1
    %p58 = por %p56, %p57
    %p59 = scmp.ne.s32.totalorder %s50, %s51
    %p60 = scmp.eq.s32.totalorder %s19, 0
    %p61 = por %p59, %p60
    %p62 = scmp.ne.s32.totalorder %s50, %s51
    %p63 = scmp.eq.s32.totalorder %s20, 1
    %p64 = por %p62, %p63
    %p66 = scmp.ne.s32.totalorder %s51, %s65
    %p67 = scmp.eq.s32.totalorder %s20, 0
    %p68 = por %p66, %p67
    %s70 = sadd.s32 %s69, 1
    %p73 = scmp.eq.s32.totalorder %s14, 1
    %p74 = scmp.ne.s32.totalorder %s69, %s71
    %p75 = scmp.eq.s32.totalorder %s14, 0
    %p76 = por %p74, %p75
    %p77 = scmp.ne.s32.totalorder %s69, %s71
    %p78 = scmp.eq.s32.totalorder %s19, 1
    %p79 = por %p77, %p78
    %p80 = scmp.ne.s32.totalorder %s71, %s72
    %p81 = scmp.eq.s32.totalorder %s19, 0
    %p82 = por %p80, %p81
    %p83 = scmp.ne.s32.totalorder %s71, %s72
    %p84 = scmp.eq.s32.totalorder %s20, 1
    %p85 = por %p83, %p84
    %p87 = scmp.ne.s32.totalorder %s72, %s86
    %p88 = scmp.eq.s32.totalorder %s20, 0
    %p89 = por %p87, %p88
    %s91 = sadd.s32 %s90, 1
    %p94 = scmp.eq.s32.totalorder %s14, 1
    %p95 = scmp.ne.s32.totalorder %s90, %s92
    %p96 = scmp.eq.s32.totalorder %s14, 0
    %p97 = por %p95, %p96
    %p98 = scmp.ne.s32.totalorder %s90, %s92
    %p99 = scmp.eq.s32.totalorder %s19, 1
    %p100 = por %p98, %p99
    %p101 = scmp.ne.s32.totalorder %s92, %s93
    %p102 = scmp.eq.s32.totalorder %s19, 0
    %p103 = por %p101, %p102
    %p104 = scmp.ne.s32.totalorder %s92, %s93
    %p105 = scmp.eq.s32.totalorder %s20, 1
    %p106 = por %p104, %p105
    %p108 = scmp.ne.s32.totalorder %s93, %s107
    %p109 = scmp.eq.s32.totalorder %s20, 0
    %p110 = por %p108, %p109
    %s112 = sadd.s32 %s111, 1
    %p115 = scmp.eq.s32.totalorder %s14, 1
    %p116 = scmp.ne.s32.totalorder %s111, %s113
    %p117 = scmp.eq.s32.totalorder %s14, 0
    %p118 = por %p116, %p117
    %p119 = scmp.ne.s32.totalorder %s111, %s113
    %p120 = scmp.eq.s32.totalorder %s19, 1
    %p121 = por %p119, %p120
    %p122 = scmp.ne.s32.totalorder %s113, %s114
    %p123 = scmp.eq.s32.totalorder %s19, 0
    %p124 = por %p122, %p123
    %p125 = scmp.ne.s32.totalorder %s113, %s114
    %p126 = scmp.eq.s32.totalorder %s20, 1
    %p127 = por %p125, %p126
    %p129 = scmp.ne.s32.totalorder %s114, %s128
    %p130 = scmp.eq.s32.totalorder %s20, 0
    %p131 = por %p129, %p130
    %s132 = ssub.s32 %s14, %s21
    %p133 = scmp.eq.s32.totalorder %s132, 0
    %s135 = sadd.s32 %s134, 1
    %s136 = scalar_select %p133, %s134, %s135
    %p139 = pneg %p133
    %p140 = scmp.eq.s32.totalorder %s14, 1
    %p141 = por %p139, %p140
    %p142 = scmp.ne.s32.totalorder %s134, %s137
    %p143 = scmp.eq.s32.totalorder %s14, 0
    %p144 = por %p142, %p143
    %p145 = scmp.ne.s32.totalorder %s134, %s137
    %p146 = scmp.eq.s32.totalorder %s19, 1
    %p147 = por %p145, %p146
    %p148 = scmp.ne.s32.totalorder %s137, %s138
    %p149 = scmp.eq.s32.totalorder %s19, 0
    %p150 = por %p148, %p149
    %p151 = scmp.ne.s32.totalorder %s137, %s138
    %p152 = scmp.eq.s32.totalorder %s20, 1
    %p153 = por %p151, %p152
    %p155 = scmp.ne.s32.totalorder %s138, %s154
    %p156 = scmp.eq.s32.totalorder %s20, 0
    %p157 = por %p155, %p156
    %s158 = ssub.s32 %s14, %s21
    %p159 = scmp.eq.s32.totalorder %s158, 0
    %s161 = sadd.s32 %s160, 1
    %s162 = scalar_select %p159, %s160, %s161
    %p165 = pneg %p159
    %p166 = scmp.eq.s32.totalorder %s14, 1
    %p167 = por %p165, %p166
    %p168 = scmp.ne.s32.totalorder %s160, %s163
    %p169 = scmp.eq.s32.totalorder %s14, 0
    %p170 = por %p168, %p169
    %p171 = scmp.ne.s32.totalorder %s160, %s163
    %p172 = scmp.eq.s32.totalorder %s19, 1
    %p173 = por %p171, %p172
    %p174 = scmp.ne.s32.totalorder %s163, %s164
    %p175 = scmp.eq.s32.totalorder %s19, 0
    %p176 = por %p174, %p175
    %p177 = scmp.ne.s32.totalorder %s163, %s164
    %p178 = scmp.eq.s32.totalorder %s20, 1
    %p179 = por %p177, %p178
    %p181 = scmp.ne.s32.totalorder %s164, %s180
    %p182 = scmp.eq.s32.totalorder %s20, 0
    %p183 = por %p181, %p182
    %s184 = ssub.s32 %s14, %s21
    %p185 = scmp.eq.s32.totalorder %s184, 0
    %s187 = sadd.s32 %s186, 1
    %s188 = scalar_select %p185, %s186, %s187
    %p191 = pneg %p185
    %p192 = scmp.eq.s32.totalorder %s14, 1
    %p193 = por %p191, %p192
    %p194 = scmp.ne.s32.totalorder %s186, %s189
    %p195 = scmp.eq.s32.totalorder %s14, 0
    %p196 = por %p194, %p195
    %p197 = scmp.ne.s32.totalorder %s186, %s189
    %p198 = scmp.eq.s32.totalorder %s19, 1
    %p199 = por %p197, %p198
    %p200 = scmp.ne.s32.totalorder %s189, %s190
    %p201 = scmp.eq.s32.totalorder %s19, 0
    %p202 = por %p200, %p201
    %p203 = scmp.ne.s32.totalorder %s189, %s190
    %p204 = scmp.eq.s32.totalorder %s20, 1
    %p205 = por %p203, %p204
    %p207 = scmp.ne.s32.totalorder %s190, %s206
    %p208 = scmp.eq.s32.totalorder %s20, 0
    %p209 = por %p207, %p208
    %p210 = scmp.le.s32.totalorder 1, %s14
    %p211 = scmp.lt.s32.totalorder %s14, 3
    %p212 = pnand %p210, %p211
    %p213 = pneg %p212
    // Predicated region
    $region9: #{decoder_bottleneck_forward.6} parent=5 // pred_check
      _
    $region10: #{decoder_bottleneck_forward.6} parent=5 // pred_check_branch
      %215 = sbr.rel (%p212) target = $region12
    $region11: #{decoder_bottleneck_forward.6} parent=5 // pred_region
      %s216 = ssub.s32 %s14, 1
      // Predicated region
      $region13: #{decoder_bottleneck_forward.6} parent=11 // pred_check
        %p217 = pneg %p61
      $region14: #{decoder_bottleneck_forward.6} parent=11 // pred_check_branch
        %219 = sbr.rel (%p217) target = $region16
      $region15: #{decoder_bottleneck_forward.6} parent=11 // pred_region
        _
      $region16: #{decoder_bottleneck_forward.6} parent=11 // pred_fallthru
        _
      // Predicated region
      $region17: #{decoder_bottleneck_forward.6} parent=11 // pred_check
        %p220 = pneg %p82
      $region18: #{decoder_bottleneck_forward.6} parent=11 // pred_check_branch
        %222 = sbr.rel (%p220) target = $region20
      $region19: #{decoder_bottleneck_forward.6} parent=11 // pred_region
        _
      $region20: #{decoder_bottleneck_forward.6} parent=11 // pred_fallthru
        _
      // Predicated region
      $region21: #{decoder_bottleneck_forward.6} parent=11 // pred_check
        %p223 = pneg %p103
      $region22: #{decoder_bottleneck_forward.6} parent=11 // pred_check_branch
        %225 = sbr.rel (%p223) target = $region24
      $region23: #{decoder_bottleneck_forward.6} parent=11 // pred_region
        _
      $region24: #{decoder_bottleneck_forward.6} parent=11 // pred_fallthru
        _
      // Predicated region
      $region25: #{decoder_bottleneck_forward.6} parent=11 // pred_check
        %p226 = pneg %p124
      $region26: #{decoder_bottleneck_forward.6} parent=11 // pred_check_branch
        %228 = sbr.rel (%p226) target = $region28
      $region27: #{decoder_bottleneck_forward.6} parent=11 // pred_region
        _
      $region28: #{decoder_bottleneck_forward.6} parent=11 // pred_fallthru
        _
    $region12: #{decoder_bottleneck_forward.6} parent=5 // pred_fallthru
      _
    %p229 = scmp.lt.s32.totalorder %s14, 2
    // Predicated region
    $region29: #{decoder_bottleneck_forward.6} parent=5 // pred_check
      %p230 = pneg %p229
    $region30: #{decoder_bottleneck_forward.6} parent=5 // pred_check_branch
      %232 = sbr.rel (%p230) target = $region32
    $region31: #{decoder_bottleneck_forward.6} parent=5 // pred_region
      // Predicated region
      $region33: #{decoder_bottleneck_forward.6} parent=31 // pred_check
        %p233 = pneg %p34
      $region34: #{decoder_bottleneck_forward.6} parent=31 // pred_check_branch
        %235 = sbr.rel (%p233) target = $region36
      $region35: #{decoder_bottleneck_forward.6} parent=31 // pred_region
        %p236 = scmp.lt.s32.totalorder %s14, 1
        %s237 = scalar_select %p236, %s14, 1
        %s238 = smul.addr %s237, 2
        %s239 = smul.addr %s238, 8
        %s240 = scalar_lea.vmem %s0, %s239
      $region36: #{decoder_bottleneck_forward.6} parent=31 // pred_fallthru
        _
    $region32: #{decoder_bottleneck_forward.6} parent=5 // pred_fallthru
      _
    %p241 = scmp.le.s32.totalorder 1, %s14
    %p242 = scmp.lt.s32.totalorder %s14, 3
    %p243 = pnand %p241, %p242
    %p244 = pneg %p243
    // Predicated region
    $region37: #{decoder_bottleneck_forward.6} parent=5 // pred_check
      _
    $region38: #{decoder_bottleneck_forward.6} parent=5 // pred_check_branch
      %246 = sbr.rel (%p243) target = $region40
    $region39: #{decoder_bottleneck_forward.6} parent=5 // pred_region
      %s247 = ssub.s32 %s14, 1
      %p248 = scmp.lt.s32.totalorder %s19, 1
      %s249 = scalar_select %p248, %s19, 1
      %s250 = smul.addr %s249, 2
      %s251 = smul.addr %s250, 8
      %s252 = scalar_lea.vmem %s0, %s251
      %p253 = pneg %p40
      %p254 = pneg %p37
      %p255 = pneg %p61
      %p256 = pneg %p58
      %p257 = pneg %p82
      %p258 = pneg %p79
      %p259 = pneg %p103
      %p260 = pneg %p100
      %p261 = pneg %p124
      %p262 = pneg %p121
      %p263 = pneg %p150
      %p264 = pneg %p147
      %p265 = scmp.lt.s32.totalorder %s19, 1
      %s266 = scalar_select %p265, %s19, 1
      %s267 = smul.addr %s266, 2
      %s268 = smul.addr %s267, 8
      %s269 = scalar_lea.vmem %s5, %s268
      %p270 = pneg %p176
      %p271 = pneg %p173
      %p272 = scmp.lt.s32.totalorder %s19, 1
      %s273 = scalar_select %p272, %s19, 1
      %s274 = smul.addr %s273, 8
      %s275 = scalar_lea.vmem %s6, %s274
      %p276 = pneg %p202
      %p277 = pneg %p199
      %p278 = scmp.lt.s32.totalorder %s19, 1
      %s279 = scalar_select %p278, %s19, 1
      %s280 = smul.addr %s279, 8
      %s281 = scalar_lea.vmem %s7, %s280
      %p282 = scmp.lt.s32.totalorder %s19, 1
      %s283 = scalar_select %p282, %s19, 1
      %s284 = smul.addr %s283, 2
      %s285 = smul.addr %s284, 8
      %s286 = scalar_lea.vmem %s0, %s285
      %p287 = scmp.lt.s32.totalorder %s19, 1
      %s288 = scalar_select %p287, %s19, 1
      %s289 = smul.addr %s288, 2
      %s290 = smul.addr %s289, 8
      %s291 = scalar_lea.vmem %s5, %s290
      %p292 = scmp.lt.s32.totalorder %s19, 1
      %s293 = scalar_select %p292, %s19, 1
      %s294 = smul.addr %s293, 8
      %s295 = scalar_lea.vmem %s6, %s294
      %p296 = scmp.lt.s32.totalorder %s19, 1
      %s297 = scalar_select %p296, %s19, 1
      %s298 = smul.addr %s297, 8
      %s299 = scalar_lea.vmem %s7, %s298
      %v300 = vld [vmem:[%s286] sm:$0xff]
      %v301 = vld [vmem:[%s286 + $0x8] sm:$0xff]
      %v302 = vld [vmem:[%s1] sm:$0xff]
      %304 = vset.pattern.permute.xlu0 0
      %305 = vperm.xlu0 %304, %v302
      %v306 = vpop.permute.xlu0 %305
      %v308 = vmul.f32 %v300, %v306
      %v309 = vmul.f32 %v301, %v306
      %v310 = vld [vmem:[%s2] sm:$0xff]
      %312 = vset.pattern.permute.xlu0 0
      %313 = vperm.xlu0 %312, %v310
      %v314 = vpop.permute.xlu0 %313
      %v316 = vadd.f32 %v308, %v314
      %v317 = vadd.f32 %v309, %v314
      %v318 = vmax.f32 %v316, 0.0
      %v319 = vmax.f32 %v317, 0.0
      %320 = vrot.lane.b32.xlu0 %v318, 17
      %v321 = vpop.permute.xlu0 %320
      %322 = vrot.lane.b32.xlu0 %v319, 17
      %v323 = vpop.permute.xlu0 %322
      %v324 = vlaneseq
      %v325 = vand.u32 %v324, 127
      %vm326 = vcmp.lt.s32.totalorder %v325, 17
      %v327 = vsel %vm326, %v321, %v323
      %v328 = vsel %vm326, %v323, %v321
      %v329 = vld [vmem:[%s4] sm:$0x3]
      %v331 = vlaneseq
      %v332 = vshrl.u32 %v331, 7
      %v333 = vsub.s32 0, %v332
      %v334 = vrot.slane %v329, %v333
      %v335 = vlaneseq
      %v336 = vshrl.u32 %v335, 7
      %v337 = vsub.s32 1, %v336
      %v338 = vrot.slane %v329, %v337
      %v341 = vmul.f32 %v328, %v334
      %v342 = vmul.f32 %v327, %v338
      %343 = vrot.lane.b32.xlu0 %v318, 16
      %v344 = vpop.permute.xlu0 %343
      %345 = vrot.lane.b32.xlu0 %v319, 16
      %v346 = vpop.permute.xlu0 %345
      %vm347 = vcmp.lt.s32.totalorder %v325, 16
      %v348 = vsel %vm347, %v344, %v346
      %v349 = vsel %vm347, %v346, %v344
      %s350 = scalar_lea.vmem %s4, 2
      %v351 = vld [vmem:[%s350] sm:$0x3]
      %v353 = vlaneseq
      %v354 = vshrl.u32 %v353, 7
      %v355 = vsub.s32 0, %v354
      %v356 = vrot.slane %v351, %v355
      %v357 = vlaneseq
      %v358 = vshrl.u32 %v357, 7
      %v359 = vsub.s32 1, %v358
      %v360 = vrot.slane %v351, %v359
      %v363 = vmul.f32 %v349, %v356
      %v364 = vmul.f32 %v348, %v360
      %365 = vrot.lane.b32.xlu0 %v318, 15
      %v366 = vpop.permute.xlu0 %365
      %367 = vrot.lane.b32.xlu0 %v319, 15
      %v368 = vpop.permute.xlu0 %367
      %vm369 = vcmp.lt.s32.totalorder %v325, 15
      %v370 = vsel %vm369, %v366, %v368
      %v371 = vsel %vm369, %v368, %v366
      %s372 = scalar_lea.vmem %s4, 4
      %v373 = vld [vmem:[%s372] sm:$0x3]
      %v375 = vlaneseq
      %v376 = vshrl.u32 %v375, 7
      %v377 = vsub.s32 0, %v376
      %v378 = vrot.slane %v373, %v377
      %v379 = vlaneseq
      %v380 = vshrl.u32 %v379, 7
      %v381 = vsub.s32 1, %v380
      %v382 = vrot.slane %v373, %v381
      %v385 = vmul.f32 %v371, %v378
      %v386 = vmul.f32 %v370, %v382
      %387 = vrot.lane.b32.xlu0 %v318, 1
      %v388 = vpop.permute.xlu0 %387
      %389 = vrot.lane.b32.xlu0 %v319, 1
      %v390 = vpop.permute.xlu0 %389
      %vm391 = vcmp.lt.s32.totalorder %v325, 1
      %v392 = vsel %vm391, %v388, %v390
      %v393 = vsel %vm391, %v390, %v388
      %s394 = scalar_lea.vmem %s4, 6
      %v395 = vld [vmem:[%s394] sm:$0x3]
      %v397 = vlaneseq
      %v398 = vshrl.u32 %v397, 7
      %v399 = vsub.s32 0, %v398
      %v400 = vrot.slane %v395, %v399
      %v401 = vlaneseq
      %v402 = vshrl.u32 %v401, 7
      %v403 = vsub.s32 1, %v402
      %v404 = vrot.slane %v395, %v403
      %v407 = vmul.f32 %v393, %v400
      %v408 = vmul.f32 %v392, %v404
      %s409 = scalar_lea.vmem %s4, 8
      %v410 = vld [vmem:[%s409] sm:$0x3]
      %v412 = vlaneseq
      %v413 = vshrl.u32 %v412, 7
      %v414 = vsub.s32 0, %v413
      %v415 = vrot.slane %v410, %v414
      %v416 = vlaneseq
      %v417 = vshrl.u32 %v416, 7
      %v418 = vsub.s32 1, %v417
      %v419 = vrot.slane %v410, %v418
      %v422 = vmul.f32 %v318, %v415
      %v423 = vmul.f32 %v319, %v419
      %424 = vrot.lane.b32.xlu0 %v318, 127
      %v425 = vpop.permute.xlu0 %424
      %426 = vrot.lane.b32.xlu0 %v319, 127
      %v427 = vpop.permute.xlu0 %426
      %vm428 = vcmp.lt.s32.totalorder %v325, 127
      %v429 = vsel %vm428, %v425, %v427
      %v430 = vsel %vm428, %v427, %v425
      %s431 = scalar_lea.vmem %s4, 10
      %v432 = vld [vmem:[%s431] sm:$0x3]
      %v434 = vlaneseq
      %v435 = vshrl.u32 %v434, 7
      %v436 = vsub.s32 0, %v435
      %v437 = vrot.slane %v432, %v436
      %v438 = vlaneseq
      %v439 = vshrl.u32 %v438, 7
      %v440 = vsub.s32 1, %v439
      %v441 = vrot.slane %v432, %v440
      %v444 = vmul.f32 %v429, %v437
      %v445 = vmul.f32 %v430, %v441
      %446 = vrot.lane.b32.xlu0 %v318, 113
      %v447 = vpop.permute.xlu0 %446
      %448 = vrot.lane.b32.xlu0 %v319, 113
      %v449 = vpop.permute.xlu0 %448
      %vm450 = vcmp.lt.s32.totalorder %v325, 113
      %v451 = vsel %vm450, %v447, %v449
      %v452 = vsel %vm450, %v449, %v447
      %s453 = scalar_lea.vmem %s4, 12
      %v454 = vld [vmem:[%s453] sm:$0x3]
      %v456 = vlaneseq
      %v457 = vshrl.u32 %v456, 7
      %v458 = vsub.s32 0, %v457
      %v459 = vrot.slane %v454, %v458
      %v460 = vlaneseq
      %v461 = vshrl.u32 %v460, 7
      %v462 = vsub.s32 1, %v461
      %v463 = vrot.slane %v454, %v462
      %v466 = vmul.f32 %v451, %v459
      %v467 = vmul.f32 %v452, %v463
      %468 = vrot.lane.b32.xlu0 %v318, 112
      %v469 = vpop.permute.xlu0 %468
      %470 = vrot.lane.b32.xlu0 %v319, 112
      %v471 = vpop.permute.xlu0 %470
      %vm472 = vcmp.lt.s32.totalorder %v325, 112
      %v473 = vsel %vm472, %v469, %v471
      %v474 = vsel %vm472, %v471, %v469
      %s475 = scalar_lea.vmem %s4, 14
      %v476 = vld [vmem:[%s475] sm:$0x3]
      %v478 = vlaneseq
      %v479 = vshrl.u32 %v478, 7
      %v480 = vsub.s32 0, %v479
      %v481 = vrot.slane %v476, %v480
      %v482 = vlaneseq
      %v483 = vshrl.u32 %v482, 7
      %v484 = vsub.s32 1, %v483
      %v485 = vrot.slane %v476, %v484
      %v488 = vmul.f32 %v473, %v481
      %v489 = vmul.f32 %v474, %v485
      %490 = vrot.lane.b32.xlu0 %v318, 111
      %v491 = vpop.permute.xlu0 %490
      %492 = vrot.lane.b32.xlu0 %v319, 111
      %v493 = vpop.permute.xlu0 %492
      %vm494 = vcmp.lt.s32.totalorder %v325, 111
      %v495 = vsel %vm494, %v491, %v493
      %v496 = vsel %vm494, %v493, %v491
      %s497 = scalar_lea.vmem %s4, 16
      %v498 = vld [vmem:[%s497] sm:$0x3]
      %v500 = vlaneseq
      %v501 = vshrl.u32 %v500, 7
      %v502 = vsub.s32 0, %v501
      %v503 = vrot.slane %v498, %v502
      %v504 = vlaneseq
      %v505 = vshrl.u32 %v504, 7
      %v506 = vsub.s32 1, %v505
      %v507 = vrot.slane %v498, %v506
      %v510 = vmul.f32 %v495, %v503
      %v511 = vmul.f32 %v496, %v507
      %v512 = vld [vmem:[%s3] sm:$0xff]
      %vm513 = vcmask 588800
      %v515 = vsel %vm513, %v512, 0
      %517 = vmatprep.subr.mxu0 %v342
      %518 = vmatpush1.msra.mxu0 %v341
      %519 = vmatprep.subr.mxu0 %v364
      %520 = vmatpush1.msra.mxu0 %v363
      %521 = vmatprep.subr.mxu0 %v386
      %522 = vmatpush1.msra.mxu0 %v385
      %523 = vmatprep.subr.mxu0 %v408
      %524 = vmatpush1.msra.mxu0 %v407
      %525 = vmatprep.subr.mxu0 %v423
      %526 = vmatpush1.msra.mxu0 %v422
      %527 = vmatprep.subr.mxu0 %v445
      %528 = vmatpush1.msra.mxu0 %v444
      %529 = vmatprep.subr.mxu0 %v467
      %530 = vmatpush1.msra.mxu0 %v466
      %531 = vmatprep.subr.mxu0 %v489
      %532 = vmatpush1.msra.mxu0 %v488
      %533 = vmatprep.subr.mxu0 %v511
      %534 = vmatpush1.msra.mxu0 %v510
      %535 = vmatprep.subr.mxu0 0.0
      %536 = vmatpush1.msra.mxu0 0.0
      %537 = vmatprep.subr.mxu0 0.0
      %538 = vmatpush1.msra.mxu0 0.0
      %539 = vmatprep.subr.mxu0 0.0
      %540 = vmatpush1.msra.mxu0 0.0
      %541 = vmatprep.subr.mxu0 0.0
      %542 = vmatpush1.msra.mxu0 0.0
      %543 = vmatprep.subr.mxu0 0.0
      %544 = vmatpush1.msra.mxu0 0.0
      %545 = vmatprep.subr.mxu0 0.0
      %546 = vmatpush1.msra.mxu0 0.0
      %547 = vmatprep.subr.mxu0 0.0
      %548 = vmatpush1.msra.mxu0 0.0
      %549 = vmatprep.subr.mxu0 0.0
      %550 = vmatpush1.msra.mxu0 0.0
      %551 = vmatprep.subr.mxu0 0.0
      %552 = vmatpush1.msra.mxu0 0.0
      %553 = vmatprep.subr.mxu0 0.0
      %554 = vmatpush1.msra.mxu0 0.0
      %555 = vmatprep.subr.mxu0 0.0
      %556 = vmatpush1.msra.mxu0 0.0
      %557 = vmatprep.subr.mxu0 0.0
      %558 = vmatpush1.msra.mxu0 0.0
      %559 = vmatprep.subr.mxu0 0.0
      %560 = vmatpush1.msra.mxu0 0.0
      %561 = vmatprep.subr.mxu0 0.0
      %562 = vmatpush1.msra.mxu0 0.0
      %563 = vmatprep.subr.mxu0 0.0
      %564 = vmatpush1.msra.mxu0 0.0
      %565 = vmatprep.subr.mxu0 0.0
      %566 = vmatpush1.msra.mxu0 0.0
      %567 = vmatprep.subr.mxu0 0.0
      %568 = vmatpush1.msra.mxu0 0.0
      %569 = vmatprep.subr.mxu0 0.0
      %570 = vmatpush1.msra.mxu0 0.0
      %571 = vmatprep.subr.mxu0 0.0
      %572 = vmatpush1.msra.mxu0 0.0
      %573 = vmatprep.subr.mxu0 0.0
      %574 = vmatpush1.msra.mxu0 0.0
      %575 = vmatprep.subr.mxu0 0.0
      %576 = vmatpush1.msra.mxu0 0.0
      %577 = vmatprep.subr.mxu0 0.0
      %578 = vmatpush1.msra.mxu0 0.0
      %579 = vmatprep.subr.mxu0 0.0
      %580 = vmatpush1.msra.mxu0 0.0
      %581 = vmatprep.mubr.f32.mxu0 0.0
      %582 = vmatmul.mubr.f32.gmra.mrb[0].mxu0 %v515
      %v583 = vpop.f32.mrb[0].mxu0
      %v584 = vadd.f32 0.0, %v583
      %v585 = vpop.f32.mrb[0].mxu0
      %v586 = vadd.f32 0.0, %v585
      %587 = vdwg.mxu0
      %588 = vst [vmem:[%s291] sm:$0xff] %v584
      %589 = vst [vmem:[%s291 + $0x8] sm:$0xff] %v586
      %v590 = vadd.f32 %v584, %v586
      %591 = vadd.xlane.f32.xlu0 %v590
      %v592 = vpop.xlane.xlu0 %591
      %vm593 = vcmask 7168
      %594 = vst.msk [vmem:[%s295] sm:$0xff] %vm593, %v592
      %v595 = vmul.f32 %v584, %v584
      %v596 = vmul.f32 %v586, %v586
      %v597 = vadd.f32 %v595, %v596
      %598 = vadd.xlane.f32.xlu0 %v597
      %v599 = vpop.xlane.xlu0 %598
      %600 = vst.msk [vmem:[%s299] sm:$0xff] %vm593, %v599
      %p601 = scmp.lt.s32.totalorder %s19, 1
      %s602 = scalar_select %p601, %s19, 1
      %s603 = smul.addr %s602, 2
      %s604 = smul.addr %s603, 8
      %s605 = scalar_lea.vmem %s5, %s604
      %p606 = scmp.lt.s32.totalorder %s19, 1
      %s607 = scalar_select %p606, %s19, 1
      %s608 = smul.addr %s607, 8
      %s609 = scalar_lea.vmem %s6, %s608
      %p610 = scmp.lt.s32.totalorder %s19, 1
      %s611 = scalar_select %p610, %s19, 1
      %s612 = smul.addr %s611, 8
      %s613 = scalar_lea.vmem %s7, %s612
      // Predicated region
      $region41: #{decoder_bottleneck_forward.6} parent=39 // pred_check
        %p614 = pneg %p147
      $region42: #{decoder_bottleneck_forward.6} parent=39 // pred_check_branch
        %616 = sbr.rel (%p614) target = $region44
      $region43: #{decoder_bottleneck_forward.6} parent=39 // pred_region
        _
      $region44: #{decoder_bottleneck_forward.6} parent=39 // pred_fallthru
        _
      // Predicated region
      $region45: #{decoder_bottleneck_forward.6} parent=39 // pred_check
        %p617 = pneg %p173
      $region46: #{decoder_bottleneck_forward.6} parent=39 // pred_check_branch
        %619 = sbr.rel (%p617) target = $region48
      $region47: #{decoder_bottleneck_forward.6} parent=39 // pred_region
        _
      $region48: #{decoder_bottleneck_forward.6} parent=39 // pred_fallthru
        _
      // Predicated region
      $region49: #{decoder_bottleneck_forward.6} parent=39 // pred_check
        %p620 = pneg %p199
      $region50: #{decoder_bottleneck_forward.6} parent=39 // pred_check_branch
        %622 = sbr.rel (%p620) target = $region52
      $region51: #{decoder_bottleneck_forward.6} parent=39 // pred_region
        _
      $region52: #{decoder_bottleneck_forward.6} parent=39 // pred_fallthru
        _
    $region40: #{decoder_bottleneck_forward.6} parent=5 // pred_fallthru
      _
    %p623 = scmp.le.s32.totalorder 2, %s14
    // Predicated region
    $region53: #{decoder_bottleneck_forward.6} parent=5 // pred_check
      %p624 = pneg %p623
    $region54: #{decoder_bottleneck_forward.6} parent=5 // pred_check_branch
      %626 = sbr.rel (%p624) target = $region56
    $region55: #{decoder_bottleneck_forward.6} parent=5 // pred_region
      %s627 = ssub.s32 %s14, 2
      // Predicated region
      $region57: #{decoder_bottleneck_forward.6} parent=55 // pred_check
        %p628 = pneg %p153
      $region58: #{decoder_bottleneck_forward.6} parent=55 // pred_check_branch
        %630 = sbr.rel (%p628) target = $region60
      $region59: #{decoder_bottleneck_forward.6} parent=55 // pred_region
        %p631 = scmp.lt.s32.totalorder %s20, 1
        %s632 = scalar_select %p631, %s20, 1
        %s633 = smul.addr %s632, 2
        %s634 = smul.addr %s633, 8
        %s635 = scalar_lea.vmem %s5, %s634
      $region60: #{decoder_bottleneck_forward.6} parent=55 // pred_fallthru
        _
      // Predicated region
      $region61: #{decoder_bottleneck_forward.6} parent=55 // pred_check
        %p636 = pneg %p179
      $region62: #{decoder_bottleneck_forward.6} parent=55 // pred_check_branch
        %638 = sbr.rel (%p636) target = $region64
      $region63: #{decoder_bottleneck_forward.6} parent=55 // pred_region
        %p639 = scmp.lt.s32.totalorder %s20, 1
        %s640 = scalar_select %p639, %s20, 1
        %s641 = smul.addr %s640, 8
        %s642 = scalar_lea.vmem %s6, %s641
      $region64: #{decoder_bottleneck_forward.6} parent=55 // pred_fallthru
        _
      // Predicated region
      $region65: #{decoder_bottleneck_forward.6} parent=55 // pred_check
        %p643 = pneg %p205
      $region66: #{decoder_bottleneck_forward.6} parent=55 // pred_check_branch
        %645 = sbr.rel (%p643) target = $region68
      $region67: #{decoder_bottleneck_forward.6} parent=55 // pred_region
        %p646 = scmp.lt.s32.totalorder %s20, 1
        %s647 = scalar_select %p646, %s20, 1
        %s648 = smul.addr %s647, 8
        %s649 = scalar_lea.vmem %s7, %s648
      $region68: #{decoder_bottleneck_forward.6} parent=55 // pred_fallthru
        _
    $region56: #{decoder_bottleneck_forward.6} parent=5 // pred_fallthru
      _
  $region6: #{decoder_bottleneck_forward.6} parent=0 // loop_footer
    %s18 = sadd.s32 1, %s14
  $region7: #{decoder_bottleneck_forward.6} parent=0 // loop_footer_branch
    %13 = sbr.rel target = $region3
  $region8: #{decoder_bottleneck_forward.6} parent=0 // loop_exit
    _

</llo_original>
